<compile_context>
chip_gen: v7x
topology: tpu7x:2x2x1
jax: 0.10.0
libtpu: 0.0.40
codegen_flags: <defaults>
</compile_context>

<pallas_src>
import jax
import jax.numpy as jnp
from jax.experimental import pallas as pl
from jax.experimental.pallas import tpu as pltpu

# Problem sizes consistent with the module (edge_attr has DIM features,
# conv1: DIM->32, conv2: 32->32, fc1: 32->32, fc2: 32->1).
DIM = 4          # "dim" in the torch script
OUT = 32         # hidden width of both NNConv layers
N = 8            # nodes per graph
E = 16           # directed edges per graph
C = 8            # graphs per grid step (chunk)  -> 128 edge rows / 64 node rows
NUM_CHUNKS = 2   # grid size (also the v7x core-split axis)
B_TOTAL = C * NUM_CHUNKS
CN = C * N       # 64 nodes per chunk
CE = C * E       # 128 edges per chunk
IN_PAD = 8       # conv1 input channels padded 4 -> 8 (sublane-friendly)
K_AUG = OUT * DIM + OUT   # 160: uniform augmented-kron width for both convs

# w_slab row offsets (sublane-stacked, 32 lanes)
W1_OFF = 0
W2_OFF = W1_OFF + K_AUG          # 160
ROOT2_OFF = W2_OFF + K_AUG       # 320
FC1_OFF = ROOT2_OFF + OUT        # 352
SMALL_OFF = FC1_OFF + OUT        # 384
W_SLAB_ROWS = SMALL_OFF + 16     # 400
# e_slab row offsets (160 lanes)
T1_OFF, R1_OFF, T2_OFF, R2_OFF = 0, 8, 16, 24
E_SLAB_ROWS = R2_OFF + OUT       # 56


def _net_mp_kernel(x_ref, ea_ref, src_ref, tgt_ref, w_ref, e_ref, out_ref):
    x = x_ref[...]        # (CN, IN_PAD) f32   node features (cols 4..7 zero)
    ea = ea_ref[...]      # (CE, IN_PAD) f32   [ea0..ea3, 1, 0, 0, 0]
    src = src_ref[...]    # (CE, 1) i32        chunk-global source node id
    tgt = tgt_ref[...]    # (1, CE) i32        chunk-global target node id

    # Block-diagonal one-hots (exact because src/tgt already carry +g*N offsets).
    lane_ids = jax.lax.broadcasted_iota(jnp.int32, (CE, CN), 1)
    G = (src == lane_ids).astype(jnp.float32)       # (CE, CN): gather  edge <- node
    sub_ids = jax.lax.broadcasted_iota(jnp.int32, (CN, CE), 0)
    S = (tgt == sub_ids).astype(jnp.float32)        # (CN, CE): scatter node <- edge

    # Constant slab slices (all 8-aligned, static).
    W_aug1 = w_ref[W1_OFF:W1_OFF + K_AUG, :]        # (160, 32)
    W_aug2 = w_ref[W2_OFF:W2_OFF + K_AUG, :]        # (160, 32)
    root2 = w_ref[ROOT2_OFF:ROOT2_OFF + OUT, :]     # (32, 32)
    w_fc1 = w_ref[FC1_OFF:FC1_OFF + OUT, :]         # (32, 32)  already (in, out)
    small = w_ref[SMALL_OFF:SMALL_OFF + 16, :]      # (16, 32)
    root1 = small[0:8, :]                           # (8, 32)   rows 4..7 zero
    bias1 = small[8:9, :]
    bias2 = small[9:10, :]
    b_fc1 = small[10:11, :]
    w_fc2 = small[11:12, :]
    b_fc2 = small[12:13, 0:1]                       # (1, 1) scalar

    T1 = e_ref[T1_OFF:T1_OFF + 8, :]                # (8, 160)
    R1 = e_ref[R1_OFF:R1_OFF + 8, :]                # (8, 160)
    T2 = e_ref[T2_OFF:T2_OFF + 8, :]                # (8, 160)
    R2 = e_ref[R2_OFF:R2_OFF + OUT, :]              # (32, 160)

    # Edge-attr side of the kron expansion (bias column included via the ones
    # feature in ea); computed once per conv layer.
    ea_T1 = jnp.dot(ea, T1, preferred_element_type=jnp.float32)   # (CE, 160)
    ea_T2 = jnp.dot(ea, T2, preferred_element_type=jnp.float32)   # (CE, 160)

    def nnconv(h, ea_T, R_aug, W_aug, root, bias):
        # h: (CN, in_pad); per-edge weighting via the bilinear/kron identity:
        #   msgs[e,o] = sum_k z_aug[e,k] * W_aug[k,o]
        #   z_aug[e, d*DIM+j] = h_src[e,d]*ea[e,j],  z_aug[e, K+d] = h_src[e,d]*1
        h_src = jnp.dot(G, h, preferred_element_type=jnp.float32)             # (CE, in_pad)
        z = ea_T * jnp.dot(h_src, R_aug, preferred_element_type=jnp.float32)  # (CE, 160)
        msgs = jnp.dot(z, W_aug, preferred_element_type=jnp.float32)          # (CE, 32)
        agg = jnp.dot(S, msgs, preferred_element_type=jnp.float32)            # (CN, 32)
        return agg + jnp.dot(h, root, preferred_element_type=jnp.float32) + bias

    h = jax.nn.relu(nnconv(x, ea_T1, R1, W_aug1, root1, bias1))
    h = jax.nn.relu(nnconv(h, ea_T2, R2, W_aug2, root2, bias2))
    h = jax.nn.relu(jnp.dot(h, w_fc1, preferred_element_type=jnp.float32) + b_fc1)
    # fc2 with lane-dense output: out[0, n] = sum_k w_fc2[0,k] * h[n,k] + b_fc2
    out_ref[...] = jax.lax.dot_general(
        w_fc2, h, (((1,), (1,)), ((), ())),
        preferred_element_type=jnp.float32) + b_fc2


def _expansion(in_ch):
    """One-hot matrices for the augmented kron expansion, padded to K_AUG cols.

    z_aug = (ea_aug @ T) * (h @ R);  column k < K=in_ch*DIM maps (d=k//DIM, j=k%DIM),
    columns K..K+in_ch-1 map the bias term (ones feature of ea_aug, h column d).
    """
    K = in_ch * DIM
    k = jnp.arange(K_AUG)
    tcol = jnp.where(k < K, k % DIM, DIM)    # which ea_aug column feeds position k
    rcol = jnp.where(k < K, k // DIM, k - K) # which h column feeds position k
    valid = k < K + in_ch
    T = ((tcol[None, :] == jnp.arange(IN_PAD)[:, None]) & valid[None, :]).astype(jnp.float32)
    r_rows = IN_PAD if in_ch <= IN_PAD else in_ch
    R = ((rcol[None, :] == jnp.arange(r_rows)[:, None]) & valid[None, :]).astype(jnp.float32)
    return T, R   # (8, 160), (in_pad_or_in_ch, 160)


def _pack_params(params):
    """Host-side re-layout of torch-convention params into 2 VMEM-friendly slabs."""
    (w_nn1, b_nn1, root1, bias1,
     w_nn2, b_nn2, root2, bias2,
     w_fc1, b_fc1, w_fc2, b_fc2) = params

    def kron_weight(w_nn, in_ch):
        # w_nn: (in_ch*OUT, DIM) torch layout, row = d*OUT + o
        # -> Wr: (in_ch*DIM, OUT), row = d*DIM + j
        return (w_nn.reshape(in_ch, OUT, DIM).transpose(0, 2, 1).reshape(in_ch * DIM, OUT))

    def aug_weight(w_nn, b_nn, in_ch):
        # W_aug = [Wr ; Bmat] zero-padded to K_AUG rows (bias folded into the kron matmul).
        w_aug = jnp.concatenate([kron_weight(w_nn, in_ch), b_nn.reshape(in_ch, OUT)], axis=0)
        return jnp.pad(w_aug, ((0, K_AUG - w_aug.shape[0]), (0, 0)))

    W_aug1 = aug_weight(w_nn1, b_nn1, DIM)   # (160, 32)
    W_aug2 = aug_weight(w_nn2, b_nn2, OUT)   # (160, 32)

    small = jnp.concatenate([
        jnp.pad(root1, ((0, IN_PAD - DIM), (0, 0))),   # rows 0:8   root1 (padded)
        bias1,                                         # row 8
        bias2,                                         # row 9
        b_fc1,                                         # row 10
        w_fc2,                                         # row 11
        jnp.broadcast_to(b_fc2, (1, OUT)),             # row 12 (scalar b_fc2)
        jnp.zeros((3, OUT), jnp.float32),              # rows 13:16 padding
    ], axis=0)                                         # (16, 32)

    w_slab = jnp.concatenate([W_aug1, W_aug2, root2, w_fc1.T, small], axis=0)  # (400, 32)

    T1, R1 = _expansion(DIM)     # (8,160), (8,160)
    T2, R2 = _expansion(OUT)     # (8,160), (32,160)
    e_slab = jnp.concatenate([T1, R1, T2, R2], axis=0)                         # (56, 160)
    return w_slab, e_slab


@jax.jit
def net_mp_forward(x, edge_attr, edge_index, params):
    """x: (B,N,DIM), edge_attr: (B,E,DIM), edge_index: (B,2,E) -> (B,N,1)."""
    Bt = x.shape[0]
    assert Bt % C == 0
    nc = Bt // C

    # Fold chunks of C graphs into the matmul M dimension.
    x_pad = jnp.pad(x, ((0, 0), (0, 0), (0, IN_PAD - DIM))).reshape(nc, CN, IN_PAD)
    ones = jnp.ones(edge_attr.shape[:2] + (1,), jnp.float32)
    zeros = jnp.zeros(edge_attr.shape[:2] + (IN_PAD - DIM - 1,), jnp.float32)
    ea_aug = jnp.concatenate([edge_attr, ones, zeros], axis=-1).reshape(nc, CE, IN_PAD)

    # Block-diagonal node ids: offset each graph's node indices by g*N within its chunk.
    offs = ((jnp.arange(Bt, dtype=jnp.int32) % C) * N)[:, None]          # (Bt, 1)
    src = (edge_index[:, 0, :].astype(jnp.int32) + offs).reshape(nc, CE)[:, :, None]  # (nc, CE, 1)
    tgt = (edge_index[:, 1, :].astype(jnp.int32) + offs).reshape(nc, CE)[:, None, :]  # (nc, 1, CE)

    w_slab, e_slab = _pack_params(params)

    out = pl.pallas_call(
        _net_mp_kernel,
        grid=(nc,),
        out_shape=jax.ShapeDtypeStruct((nc, 1, CN), jnp.float32),
        in_specs=[
            pl.BlockSpec((None, CN, IN_PAD), lambda c: (c, 0, 0)),   # x chunk
            pl.BlockSpec((None, CE, IN_PAD), lambda c: (c, 0, 0)),   # edge_attr (augmented)
            pl.BlockSpec((None, CE, 1), lambda c: (c, 0, 0)),        # src (sublane-oriented)
            pl.BlockSpec((None, 1, CE), lambda c: (c, 0, 0)),        # tgt (lane-dense)
            pl.BlockSpec((W_SLAB_ROWS, OUT), lambda c: (0, 0)),      # weight slab (resident)
            pl.BlockSpec((E_SLAB_ROWS, K_AUG), lambda c: (0, 0)),    # expansion slab (resident)
        ],
        out_specs=pl.BlockSpec((None, 1, CN), lambda c: (c, 0, 0)),
        compiler_params=pltpu.CompilerParams(
            dimension_semantics=("parallel",)),   # chunk axis -> core split on v7x
    )(x_pad, ea_aug, src, tgt, w_slab, e_slab)

    # (nc, 1, CN) lane-dense slabs -> torch convention (B, N, 1).
    return out.reshape(Bt, N)[:, :, None]


def init_params(key):
    """Deterministic parameter init, torch Linear shapes: W (out, in), b (1, out)."""
    ks = jax.random.split(key, 12)

    def u(k, shape, fan_in):
        bound = 1.0 / jnp.sqrt(float(fan_in))
        return jax.random.uniform(k, shape, jnp.float32, -bound, bound)

    # conv1: nn1_short = Linear(DIM, DIM*OUT); root1 (DIM, OUT); bias1 (1, OUT)
    w_nn1 = u(ks[0], (DIM * OUT, DIM), DIM)
    b_nn1 = u(ks[1], (1, DIM * OUT), DIM)
    root1 = u(ks[2], (DIM, OUT), DIM)
    bias1 = u(ks[3], (1, OUT), DIM)
    # conv2: nn2_short = Linear(DIM, OUT*OUT); root2 (OUT, OUT); bias2 (1, OUT)
    w_nn2 = u(ks[4], (OUT * OUT, DIM), DIM)
    b_nn2 = u(ks[5], (1, OUT * OUT), DIM)
    root2 = u(ks[6], (OUT, OUT), OUT)
    bias2 = u(ks[7], (1, OUT), OUT)
    # fc1: Linear(32, 32), fc2: Linear(32, 1)
    w_fc1 = u(ks[8], (OUT, OUT), OUT)
    b_fc1 = u(ks[9], (1, OUT), OUT)
    w_fc2 = u(ks[10], (1, OUT), OUT)
    b_fc2 = u(ks[11], (1, 1), OUT)
    return (w_nn1, b_nn1, root1, bias1,
            w_nn2, b_nn2, root2, bias2,
            w_fc1, b_fc1, w_fc2, b_fc2)


def net_mp_reference(x, edge_attr, edge_index, params):
    """Pure-JAX single-graph reference of the torch forward (for validation)."""
    (w_nn1, b_nn1, root1, bias1,
     w_nn2, b_nn2, root2, bias2,
     w_fc1, b_fc1, w_fc2, b_fc2) = params
    src, tgt = edge_index[0], edge_index[1]

    def nnconv(h, in_ch, w_nn, b_nn, root, bias):
        we = (edge_attr @ w_nn.T + b_nn).reshape(E, in_ch, OUT)
        msgs = jnp.einsum('ed,edo->eo', h[src], we)
        agg = jnp.zeros((N, OUT), jnp.float32).at[tgt].add(msgs)
        return agg + h @ root + bias

    h = jax.nn.relu(nnconv(x, DIM, w_nn1, b_nn1, root1, bias1))
    h = jax.nn.relu(nnconv(h, OUT, w_nn2, b_nn2, root2, bias2))
    h = jax.nn.relu(h @ w_fc1.T + b_fc1)
    return h @ w_fc2.T + b_fc2


if __name__ == "__main__":
    key = jax.random.PRNGKey(0)
    k_x, k_ea, k_src, k_tgt, k_p = jax.random.split(key, 5)

    x = jax.random.normal(k_x, (B_TOTAL, N, DIM), jnp.float32)
    edge_attr = jax.random.normal(k_ea, (B_TOTAL, E, DIM), jnp.float32)
    edge_index = jnp.stack([
        jax.random.randint(k_src, (B_TOTAL, E), 0, N, jnp.int32),
        jax.random.randint(k_tgt, (B_TOTAL, E), 0, N, jnp.int32),
    ], axis=1)  # (B_TOTAL, 2, E): row 0 = source, row 1 = target

    params = init_params(k_p)

    out = net_mp_forward(x, edge_attr, edge_index, params)
    out = jax.block_until_ready(out)

    ref = jax.vmap(net_mp_reference, in_axes=(0, 0, 0, None))(x, edge_attr, edge_index, params)
    assert out.shape == (B_TOTAL, N, 1)
    assert jnp.allclose(out, ref, atol=1e-3, rtol=1e-3), (out, ref)
    print("KERNEL_OK")
</pallas_src>

<mosaic_0001>
module attributes {stable_mosaic.version = 11 : i64} {
  func.func @_net_mp_kernel(%arg0: i32, %arg1: memref<1x64x8xf32, #tpu.memory_space<vmem>>, %arg2: memref<1x128x8xf32, #tpu.memory_space<vmem>>, %arg3: memref<1x128x1xi32, #tpu.memory_space<vmem>>, %arg4: memref<1x1x128xi32, #tpu.memory_space<vmem>>, %arg5: memref<400x32xf32, #tpu.memory_space<vmem>>, %arg6: memref<56x160xf32, #tpu.memory_space<vmem>>, %arg7: memref<1x1x64xf32, #tpu.memory_space<vmem>>) attributes {dimension_semantics = [#tpu.dimension_semantics<parallel>], iteration_bounds = array<i64: 2>, scalar_prefetch = 0 : i64, scratch_operands = 0 : i64, tpu.core_type = #tpu.core_type<tc>, window_params = [{transform_indices = @transform_0, window_bounds = array<i64: 1, 64, 8>}, {transform_indices = @transform_1, window_bounds = array<i64: 1, 128, 8>}, {transform_indices = @transform_2, window_bounds = array<i64: 1, 128, 1>}, {transform_indices = @transform_3, window_bounds = array<i64: 1, 1, 128>}, {pipeline_mode = #tpu.pipeline_mode<synchronous>, transform_indices = @transform_4, window_bounds = array<i64: 400, 32>}, {pipeline_mode = #tpu.pipeline_mode<synchronous>, transform_indices = @transform_5, window_bounds = array<i64: 56, 160>}, {transform_indices = @transform_6, window_bounds = array<i64: 1, 1, 64>}]} {
    %c0 = arith.constant 0 : index
    %c0_0 = arith.constant 0 : index
    %c0_1 = arith.constant 0 : index
    %0 = vector.load %arg1[%c0, %c0_0, %c0_1] : memref<1x64x8xf32, #tpu.memory_space<vmem>>, vector<1x64x8xf32>
    %1 = vector.shape_cast %0 : vector<1x64x8xf32> to vector<64x8xf32>
    %c0_2 = arith.constant 0 : index
    %c0_3 = arith.constant 0 : index
    %c0_4 = arith.constant 0 : index
    %2 = vector.load %arg2[%c0_2, %c0_3, %c0_4] : memref<1x128x8xf32, #tpu.memory_space<vmem>>, vector<1x128x8xf32>
    %3 = vector.shape_cast %2 : vector<1x128x8xf32> to vector<128x8xf32>
    %c0_5 = arith.constant 0 : index
    %c0_6 = arith.constant 0 : index
    %c0_7 = arith.constant 0 : index
    %4 = vector.load %arg3[%c0_5, %c0_6, %c0_7] : memref<1x128x1xi32, #tpu.memory_space<vmem>>, vector<1x128x1xi32>
    %5 = vector.shape_cast %4 : vector<1x128x1xi32> to vector<128x1xi32>
    %c0_8 = arith.constant 0 : index
    %c0_9 = arith.constant 0 : index
    %c0_10 = arith.constant 0 : index
    %6 = vector.load %arg4[%c0_8, %c0_9, %c0_10] : memref<1x1x128xi32, #tpu.memory_space<vmem>>, vector<1x1x128xi32>
    %7 = vector.shape_cast %6 : vector<1x1x128xi32> to vector<1x128xi32>
    %8 = tpu.iota {dimensions = array<i32: 1>} : vector<128x64xi32>
    %9 = vector.broadcast %5 : vector<128x1xi32> to vector<128x64xi32>
    %10 = arith.cmpi eq, %9, %8 : vector<128x64xi32>
    %11 = arith.extui %10 : vector<128x64xi1> to vector<128x64xi32>
    %12 = arith.sitofp %11 : vector<128x64xi32> to vector<128x64xf32>
    %13 = tpu.iota {dimensions = array<i32: 0>} : vector<64x128xi32>
    %14 = vector.broadcast %7 : vector<1x128xi32> to vector<64x128xi32>
    %15 = arith.cmpi eq, %14, %13 : vector<64x128xi32>
    %16 = arith.extui %15 : vector<64x128xi1> to vector<64x128xi32>
    %17 = arith.sitofp %16 : vector<64x128xi32> to vector<64x128xf32>
    %c0_11 = arith.constant 0 : index
    %c0_12 = arith.constant 0 : index
    %18 = vector.load %arg5[%c0_11, %c0_12] : memref<400x32xf32, #tpu.memory_space<vmem>>, vector<160x32xf32>
    %c160 = arith.constant 160 : index
    %c0_13 = arith.constant 0 : index
    %19 = vector.load %arg5[%c160, %c0_13] : memref<400x32xf32, #tpu.memory_space<vmem>>, vector<160x32xf32>
    %c320 = arith.constant 320 : index
    %c0_14 = arith.constant 0 : index
    %20 = vector.load %arg5[%c320, %c0_14] : memref<400x32xf32, #tpu.memory_space<vmem>>, vector<32x32xf32>
    %c352 = arith.constant 352 : index
    %c0_15 = arith.constant 0 : index
    %21 = vector.load %arg5[%c352, %c0_15] : memref<400x32xf32, #tpu.memory_space<vmem>>, vector<32x32xf32>
    %c384 = arith.constant 384 : index
    %c0_16 = arith.constant 0 : index
    %22 = vector.load %arg5[%c384, %c0_16] : memref<400x32xf32, #tpu.memory_space<vmem>>, vector<16x32xf32>
    %23 = vector.extract_strided_slice %22 {offsets = [0, 0], sizes = [8, 32], strides = [1, 1]} : vector<16x32xf32> to vector<8x32xf32>
    %24 = vector.extract_strided_slice %22 {offsets = [8, 0], sizes = [1, 32], strides = [1, 1]} : vector<16x32xf32> to vector<1x32xf32>
    %25 = vector.extract_strided_slice %22 {offsets = [9, 0], sizes = [1, 32], strides = [1, 1]} : vector<16x32xf32> to vector<1x32xf32>
    %26 = vector.extract_strided_slice %22 {offsets = [10, 0], sizes = [1, 32], strides = [1, 1]} : vector<16x32xf32> to vector<1x32xf32>
    %27 = vector.extract_strided_slice %22 {offsets = [11, 0], sizes = [1, 32], strides = [1, 1]} : vector<16x32xf32> to vector<1x32xf32>
    %28 = vector.extract_strided_slice %22 {offsets = [12, 0], sizes = [1, 1], strides = [1, 1]} : vector<16x32xf32> to vector<1x1xf32>
    %c0_17 = arith.constant 0 : index
    %c0_18 = arith.constant 0 : index
    %29 = vector.load %arg6[%c0_17, %c0_18] : memref<56x160xf32, #tpu.memory_space<vmem>>, vector<8x160xf32>
    %c8 = arith.constant 8 : index
    %c0_19 = arith.constant 0 : index
    %30 = vector.load %arg6[%c8, %c0_19] : memref<56x160xf32, #tpu.memory_space<vmem>>, vector<8x160xf32>
    %c16 = arith.constant 16 : index
    %c0_20 = arith.constant 0 : index
    %31 = vector.load %arg6[%c16, %c0_20] : memref<56x160xf32, #tpu.memory_space<vmem>>, vector<8x160xf32>
    %c24 = arith.constant 24 : index
    %c0_21 = arith.constant 0 : index
    %32 = vector.load %arg6[%c24, %c0_21] : memref<56x160xf32, #tpu.memory_space<vmem>>, vector<32x160xf32>
    %cst = arith.constant dense<0.000000e+00> : vector<128x160xf32>
    %33 = tpu.matmul %3, %29, %cst {dimension_numbers = #tpu.dot_dimension_numbers<[1], [0], [0], [1], [0, 0, 1, 1], [], []>} : vector<128x8xf32>, vector<8x160xf32>, vector<128x160xf32> -> vector<128x160xf32>
    %cst_22 = arith.constant dense<0.000000e+00> : vector<128x160xf32>
    %34 = tpu.matmul %3, %31, %cst_22 {dimension_numbers = #tpu.dot_dimension_numbers<[1], [0], [0], [1], [0, 0, 1, 1], [], []>} : vector<128x8xf32>, vector<8x160xf32>, vector<128x160xf32> -> vector<128x160xf32>
    %cst_23 = arith.constant dense<0.000000e+00> : vector<128x8xf32>
    %35 = tpu.matmul %12, %1, %cst_23 {dimension_numbers = #tpu.dot_dimension_numbers<[1], [0], [0], [1], [0, 0, 1, 1], [], []>} : vector<128x64xf32>, vector<64x8xf32>, vector<128x8xf32> -> vector<128x8xf32>
    %cst_24 = arith.constant dense<0.000000e+00> : vector<128x160xf32>
    %36 = tpu.matmul %35, %30, %cst_24 {dimension_numbers = #tpu.dot_dimension_numbers<[1], [0], [0], [1], [0, 0, 1, 1], [], []>} : vector<128x8xf32>, vector<8x160xf32>, vector<128x160xf32> -> vector<128x160xf32>
    %37 = arith.mulf %33, %36 : vector<128x160xf32>
    %cst_25 = arith.constant dense<0.000000e+00> : vector<128x32xf32>
    %38 = tpu.matmul %37, %18, %cst_25 {dimension_numbers = #tpu.dot_dimension_numbers<[1], [0], [0], [1], [0, 0, 1, 1], [], []>} : vector<128x160xf32>, vector<160x32xf32>, vector<128x32xf32> -> vector<128x32xf32>
    %cst_26 = arith.constant dense<0.000000e+00> : vector<64x32xf32>
    %39 = tpu.matmul %17, %38, %cst_26 {dimension_numbers = #tpu.dot_dimension_numbers<[1], [0], [0], [1], [0, 0, 1, 1], [], []>} : vector<64x128xf32>, vector<128x32xf32>, vector<64x32xf32> -> vector<64x32xf32>
    %cst_27 = arith.constant dense<0.000000e+00> : vector<64x32xf32>
    %40 = tpu.matmul %1, %23, %cst_27 {dimension_numbers = #tpu.dot_dimension_numbers<[1], [0], [0], [1], [0, 0, 1, 1], [], []>} : vector<64x8xf32>, vector<8x32xf32>, vector<64x32xf32> -> vector<64x32xf32>
    %41 = arith.addf %39, %40 : vector<64x32xf32>
    %42 = vector.broadcast %24 : vector<1x32xf32> to vector<64x32xf32>
    %43 = arith.addf %41, %42 : vector<64x32xf32>
    %cst_28 = arith.constant 0.000000e+00 : f32
    %44 = vector.broadcast %cst_28 : f32 to vector<64x32xf32>
    %45 = arith.maximumf %43, %44 : vector<64x32xf32>
    %cst_29 = arith.constant dense<0.000000e+00> : vector<128x32xf32>
    %46 = tpu.matmul %12, %45, %cst_29 {dimension_numbers = #tpu.dot_dimension_numbers<[1], [0], [0], [1], [0, 0, 1, 1], [], []>} : vector<128x64xf32>, vector<64x32xf32>, vector<128x32xf32> -> vector<128x32xf32>
    %cst_30 = arith.constant dense<0.000000e+00> : vector<128x160xf32>
    %47 = tpu.matmul %46, %32, %cst_30 {dimension_numbers = #tpu.dot_dimension_numbers<[1], [0], [0], [1], [0, 0, 1, 1], [], []>} : vector<128x32xf32>, vector<32x160xf32>, vector<128x160xf32> -> vector<128x160xf32>
    %48 = arith.mulf %34, %47 : vector<128x160xf32>
    %cst_31 = arith.constant dense<0.000000e+00> : vector<128x32xf32>
    %49 = tpu.matmul %48, %19, %cst_31 {dimension_numbers = #tpu.dot_dimension_numbers<[1], [0], [0], [1], [0, 0, 1, 1], [], []>} : vector<128x160xf32>, vector<160x32xf32>, vector<128x32xf32> -> vector<128x32xf32>
    %cst_32 = arith.constant dense<0.000000e+00> : vector<64x32xf32>
    %50 = tpu.matmul %17, %49, %cst_32 {dimension_numbers = #tpu.dot_dimension_numbers<[1], [0], [0], [1], [0, 0, 1, 1], [], []>} : vector<64x128xf32>, vector<128x32xf32>, vector<64x32xf32> -> vector<64x32xf32>
    %cst_33 = arith.constant dense<0.000000e+00> : vector<64x32xf32>
    %51 = tpu.matmul %45, %20, %cst_33 {dimension_numbers = #tpu.dot_dimension_numbers<[1], [0], [0], [1], [0, 0, 1, 1], [], []>} : vector<64x32xf32>, vector<32x32xf32>, vector<64x32xf32> -> vector<64x32xf32>
    %52 = arith.addf %50, %51 : vector<64x32xf32>
    %53 = vector.broadcast %25 : vector<1x32xf32> to vector<64x32xf32>
    %54 = arith.addf %52, %53 : vector<64x32xf32>
    %cst_34 = arith.constant 0.000000e+00 : f32
    %55 = vector.broadcast %cst_34 : f32 to vector<64x32xf32>
    %56 = arith.maximumf %54, %55 : vector<64x32xf32>
    %cst_35 = arith.constant dense<0.000000e+00> : vector<64x32xf32>
    %57 = tpu.matmul %56, %21, %cst_35 {dimension_numbers = #tpu.dot_dimension_numbers<[1], [0], [0], [1], [0, 0, 1, 1], [], []>} : vector<64x32xf32>, vector<32x32xf32>, vector<64x32xf32> -> vector<64x32xf32>
    %58 = vector.broadcast %26 : vector<1x32xf32> to vector<64x32xf32>
    %59 = arith.addf %57, %58 : vector<64x32xf32>
    %cst_36 = arith.constant 0.000000e+00 : f32
    %60 = vector.broadcast %cst_36 : f32 to vector<64x32xf32>
    %61 = arith.maximumf %59, %60 : vector<64x32xf32>
    %cst_37 = arith.constant dense<0.000000e+00> : vector<1x64xf32>
    %62 = tpu.matmul %27, %61, %cst_37 {dimension_numbers = #tpu.dot_dimension_numbers<[1], [1], [0], [0], [0, 0, 1, 0], [], []>} : vector<1x32xf32>, vector<64x32xf32>, vector<1x64xf32> -> vector<1x64xf32>
    %63 = vector.broadcast %28 : vector<1x1xf32> to vector<1x64xf32>
    %64 = arith.addf %62, %63 : vector<1x64xf32>
    %c0_38 = arith.constant 0 : index
    %c0_39 = arith.constant 0 : index
    %c0_40 = arith.constant 0 : index
    %65 = vector.load %arg7[%c0_38, %c0_39, %c0_40] : memref<1x1x64xf32, #tpu.memory_space<vmem>>, vector<1x1x64xf32>
    %66 = vector.shape_cast %65 : vector<1x1x64xf32> to vector<1x64xf32>
    %67 = vector.shape_cast %64 : vector<1x64xf32> to vector<1x1x64xf32>
    tpu.vector_store %arg7[%c0_38, %c0_39, %c0_40], %67 {strides = array<i32>} : memref<1x1x64xf32, #tpu.memory_space<vmem>>, vector<1x1x64xf32>,
    return
  }
  func.func @transform_0(%arg0: i32) -> (i32, i32, i32) {
    %c0_i32 = arith.constant 0 : i32
    %c0_i32_0 = arith.constant 0 : i32
    %c0_i32_1 = arith.constant 0 : i32
    return %arg0, %c0_i32, %c0_i32_0 : i32, i32, i32
  }
  func.func @transform_1(%arg0: i32) -> (i32, i32, i32) {
    %c0_i32 = arith.constant 0 : i32
    %c0_i32_0 = arith.constant 0 : i32
    %c0_i32_1 = arith.constant 0 : i32
    return %arg0, %c0_i32, %c0_i32_0 : i32, i32, i32
  }
  func.func @transform_2(%arg0: i32) -> (i32, i32, i32) {
    %c0_i32 = arith.constant 0 : i32
    %c0_i32_0 = arith.constant 0 : i32
    %c0_i32_1 = arith.constant 0 : i32
    return %arg0, %c0_i32, %c0_i32_0 : i32, i32, i32
  }
  func.func @transform_3(%arg0: i32) -> (i32, i32, i32) {
    %c0_i32 = arith.constant 0 : i32
    %c0_i32_0 = arith.constant 0 : i32
    %c0_i32_1 = arith.constant 0 : i32
    return %arg0, %c0_i32, %c0_i32_0 : i32, i32, i32
  }
  func.func @transform_4(%arg0: i32) -> (i32, i32) {
    %c0_i32 = arith.constant 0 : i32
    %c0_i32_0 = arith.constant 0 : i32
    %c0_i32_1 = arith.constant 0 : i32
    return %c0_i32, %c0_i32_0 : i32, i32
  }
  func.func @transform_5(%arg0: i32) -> (i32, i32) {
    %c0_i32 = arith.constant 0 : i32
    %c0_i32_0 = arith.constant 0 : i32
    %c0_i32_1 = arith.constant 0 : i32
    return %c0_i32, %c0_i32_0 : i32, i32
  }
  func.func @transform_6(%arg0: i32) -> (i32, i32, i32) {
    %c0_i32 = arith.constant 0 : i32
    %c0_i32_0 = arith.constant 0 : i32
    %c0_i32_1 = arith.constant 0 : i32
    return %arg0, %c0_i32, %c0_i32_0 : i32, i32, i32
  }
}

</mosaic_0001>

<llo_original>
// kernel: net_mp_forward.1
$region0: #{net_mp_forward.1}
  #allocation0 [shape = 'u32[]', space=smem, size = 0x4, offset = 0x4, fixed_abs, tag = 'smem constant byte address 0x4 - core index']
  #allocation1 [shape = 'u32[144,128]{1,0:T(1,128)}', space=vmem, size = 0x12000, scoped, tag = 'internal scratch']
  %s0 = inlined_call_operand.vmem [shape: f32[2,64,8], index: 0, kind: input, shape index: {}]
  %s1 = inlined_call_operand.vmem [shape: f32[2,128,8], index: 1, kind: input, shape index: {}]
  %s2 = inlined_call_operand.vmem [shape: s32[2,128,1], index: 2, kind: input, shape index: {}]
  %s3 = inlined_call_operand.vmem [shape: s32[2,1,128], index: 3, kind: input, shape index: {}]
  %s4 = inlined_call_operand.vmem [shape: f32[400,32], index: 4, kind: input, shape index: {}]
  %s5 = inlined_call_operand.vmem [shape: f32[56,160], index: 5, kind: input, shape index: {}]
  %s6 = inlined_call_operand.vmem [shape: f32[2,1,64], index: 6, kind: output, shape index: {}]
  %s7 = sld [smem:[#allocation0]]
  $region57: #{net_mp_forward.1} parent=0
    _
  %s9 = ssub.s32 1, %s7
  %s10 = scalar_select 0, %s9, %s7
  loop: start=0, step=1, limit=4
  $region2: #{net_mp_forward.1} parent=0 // loop_pre_header
    _
  $region3: #{net_mp_forward.1} parent=0 // loop_header
    %s12 = sphi 0, %s16
    %p13 = scmp.ge.s32.totalorder %s12, 4
    %s22 = sphi 0, %s24
    %s25 = sphi 0, %s22
    %s26 = sphi 0, %s25
    %s42 = sphi 0, %s26
    %s48 = sphi 0, %s50
    %s51 = sphi 0, %s48
    %s52 = sphi 0, %s51
    %s68 = sphi 0, %s52
    %s74 = sphi 0, %s76
    %s77 = sphi 0, %s74
    %s78 = sphi 0, %s77
    %s94 = sphi 0, %s78
    %s100 = sphi 0, %s102
    %s103 = sphi 0, %s100
    %s104 = sphi 0, %s103
    %s120 = sphi 0, %s104
    %s124 = sphi 0, %s124
    %s126 = sphi 0, %s124
    %s127 = sphi 0, %s126
    %s141 = sphi 0, %s127
    %s145 = sphi 0, %s145
    %s147 = sphi 0, %s145
    %s148 = sphi 0, %s147
    %s162 = sphi 0, %s148
    %s168 = sphi 0, %s170
    %s171 = sphi 0, %s168
    %s172 = sphi 0, %s171
    %s188 = sphi 0, %s172
  $region4: #{net_mp_forward.1} parent=0 // loop_header_branch
    %15 = sbr.rel (%p13) target = $region8
  $region5: #{net_mp_forward.1} parent=0 // loop_body
    %s17 = ssub.s32 %s12, 1
    %s18 = ssub.s32 %s12, 2
    %s19 = sadd.s32 %s12, 1
    %s20 = ssub.s32 %s12, %s19
    %p21 = scmp.eq.s32.totalorder %s20, 0
    %s23 = sadd.s32 %s22, 1
    %s24 = scalar_select %p21, %s22, %s23
    %p27 = pneg %p21
    %p28 = scmp.eq.s32.totalorder %s12, 1
    %p29 = por %p27, %p28
    %p30 = scmp.ne.s32.totalorder %s22, %s25
    %p31 = scmp.eq.s32.totalorder %s12, 0
    %p32 = por %p30, %p31
    %p33 = scmp.ne.s32.totalorder %s22, %s25
    %p34 = scmp.eq.s32.totalorder %s17, 1
    %p35 = por %p33, %p34
    %p36 = scmp.ne.s32.totalorder %s25, %s26
    %p37 = scmp.eq.s32.totalorder %s17, 0
    %p38 = por %p36, %p37
    %p39 = scmp.ne.s32.totalorder %s25, %s26
    %p40 = scmp.eq.s32.totalorder %s18, 1
    %p41 = por %p39, %p40
    %p43 = scmp.ne.s32.totalorder %s26, %s42
    %p44 = scmp.eq.s32.totalorder %s18, 0
    %p45 = por %p43, %p44
    %s46 = ssub.s32 %s12, %s19
    %p47 = scmp.eq.s32.totalorder %s46, 0
    %s49 = sadd.s32 %s48, 1
    %s50 = scalar_select %p47, %s48, %s49
    %p53 = pneg %p47
    %p54 = scmp.eq.s32.totalorder %s12, 1
    %p55 = por %p53, %p54
    %p56 = scmp.ne.s32.totalorder %s48, %s51
    %p57 = scmp.eq.s32.totalorder %s12, 0
    %p58 = por %p56, %p57
    %p59 = scmp.ne.s32.totalorder %s48, %s51
    %p60 = scmp.eq.s32.totalorder %s17, 1
    %p61 = por %p59, %p60
    %p62 = scmp.ne.s32.totalorder %s51, %s52
    %p63 = scmp.eq.s32.totalorder %s17, 0
    %p64 = por %p62, %p63
    %p65 = scmp.ne.s32.totalorder %s51, %s52
    %p66 = scmp.eq.s32.totalorder %s18, 1
    %p67 = por %p65, %p66
    %p69 = scmp.ne.s32.totalorder %s52, %s68
    %p70 = scmp.eq.s32.totalorder %s18, 0
    %p71 = por %p69, %p70
    %s72 = ssub.s32 %s12, %s19
    %p73 = scmp.eq.s32.totalorder %s72, 0
    %s75 = sadd.s32 %s74, 1
    %s76 = scalar_select %p73, %s74, %s75
    %p79 = pneg %p73
    %p80 = scmp.eq.s32.totalorder %s12, 1
    %p81 = por %p79, %p80
    %p82 = scmp.ne.s32.totalorder %s74, %s77
    %p83 = scmp.eq.s32.totalorder %s12, 0
    %p84 = por %p82, %p83
    %p85 = scmp.ne.s32.totalorder %s74, %s77
    %p86 = scmp.eq.s32.totalorder %s17, 1
    %p87 = por %p85, %p86
    %p88 = scmp.ne.s32.totalorder %s77, %s78
    %p89 = scmp.eq.s32.totalorder %s17, 0
    %p90 = por %p88, %p89
    %p91 = scmp.ne.s32.totalorder %s77, %s78
    %p92 = scmp.eq.s32.totalorder %s18, 1
    %p93 = por %p91, %p92
    %p95 = scmp.ne.s32.totalorder %s78, %s94
    %p96 = scmp.eq.s32.totalorder %s18, 0
    %p97 = por %p95, %p96
    %s98 = ssub.s32 %s12, %s19
    %p99 = scmp.eq.s32.totalorder %s98, 0
    %s101 = sadd.s32 %s100, 1
    %s102 = scalar_select %p99, %s100, %s101
    %p105 = pneg %p99
    %p106 = scmp.eq.s32.totalorder %s12, 1
    %p107 = por %p105, %p106
    %p108 = scmp.ne.s32.totalorder %s100, %s103
    %p109 = scmp.eq.s32.totalorder %s12, 0
    %p110 = por %p108, %p109
    %p111 = scmp.ne.s32.totalorder %s100, %s103
    %p112 = scmp.eq.s32.totalorder %s17, 1
    %p113 = por %p111, %p112
    %p114 = scmp.ne.s32.totalorder %s103, %s104
    %p115 = scmp.eq.s32.totalorder %s17, 0
    %p116 = por %p114, %p115
    %p117 = scmp.ne.s32.totalorder %s103, %s104
    %p118 = scmp.eq.s32.totalorder %s18, 1
    %p119 = por %p117, %p118
    %p121 = scmp.ne.s32.totalorder %s104, %s120
    %p122 = scmp.eq.s32.totalorder %s18, 0
    %p123 = por %p121, %p122
    %s125 = sadd.s32 %s124, 1
    %p128 = scmp.eq.s32.totalorder %s12, 1
    %p129 = scmp.ne.s32.totalorder %s124, %s126
    %p130 = scmp.eq.s32.totalorder %s12, 0
    %p131 = por %p129, %p130
    %p132 = scmp.ne.s32.totalorder %s124, %s126
    %p133 = scmp.eq.s32.totalorder %s17, 1
    %p134 = por %p132, %p133
    %p135 = scmp.ne.s32.totalorder %s126, %s127
    %p136 = scmp.eq.s32.totalorder %s17, 0
    %p137 = por %p135, %p136
    %p138 = scmp.ne.s32.totalorder %s126, %s127
    %p139 = scmp.eq.s32.totalorder %s18, 1
    %p140 = por %p138, %p139
    %p142 = scmp.ne.s32.totalorder %s127, %s141
    %p143 = scmp.eq.s32.totalorder %s18, 0
    %p144 = por %p142, %p143
    %s146 = sadd.s32 %s145, 1
    %p149 = scmp.eq.s32.totalorder %s12, 1
    %p150 = scmp.ne.s32.totalorder %s145, %s147
    %p151 = scmp.eq.s32.totalorder %s12, 0
    %p152 = por %p150, %p151
    %p153 = scmp.ne.s32.totalorder %s145, %s147
    %p154 = scmp.eq.s32.totalorder %s17, 1
    %p155 = por %p153, %p154
    %p156 = scmp.ne.s32.totalorder %s147, %s148
    %p157 = scmp.eq.s32.totalorder %s17, 0
    %p158 = por %p156, %p157
    %p159 = scmp.ne.s32.totalorder %s147, %s148
    %p160 = scmp.eq.s32.totalorder %s18, 1
    %p161 = por %p159, %p160
    %p163 = scmp.ne.s32.totalorder %s148, %s162
    %p164 = scmp.eq.s32.totalorder %s18, 0
    %p165 = por %p163, %p164
    %s166 = ssub.s32 %s12, %s19
    %p167 = scmp.eq.s32.totalorder %s166, 0
    %s169 = sadd.s32 %s168, 1
    %s170 = scalar_select %p167, %s168, %s169
    %p173 = pneg %p167
    %p174 = scmp.eq.s32.totalorder %s12, 1
    %p175 = por %p173, %p174
    %p176 = scmp.ne.s32.totalorder %s168, %s171
    %p177 = scmp.eq.s32.totalorder %s12, 0
    %p178 = por %p176, %p177
    %p179 = scmp.ne.s32.totalorder %s168, %s171
    %p180 = scmp.eq.s32.totalorder %s17, 1
    %p181 = por %p179, %p180
    %p182 = scmp.ne.s32.totalorder %s171, %s172
    %p183 = scmp.eq.s32.totalorder %s17, 0
    %p184 = por %p182, %p183
    %p185 = scmp.ne.s32.totalorder %s171, %s172
    %p186 = scmp.eq.s32.totalorder %s18, 1
    %p187 = por %p185, %p186
    %p189 = scmp.ne.s32.totalorder %s172, %s188
    %p190 = scmp.eq.s32.totalorder %s18, 0
    %p191 = por %p189, %p190
    %p192 = scmp.le.s32.totalorder 1, %s12
    %p193 = scmp.lt.s32.totalorder %s12, 3
    %p194 = pnand %p192, %p193
    %p195 = pneg %p194
    // Predicated region
    $region9: #{net_mp_forward.1} parent=5 // pred_check
      _
    $region10: #{net_mp_forward.1} parent=5 // pred_check_branch
      %197 = sbr.rel (%p194) target = $region12
    $region11: #{net_mp_forward.1} parent=5 // pred_region
      %s198 = ssub.s32 %s12, 1
      // Predicated region
      $region13: #{net_mp_forward.1} parent=11 // pred_check
        %p199 = pneg %p137
      $region14: #{net_mp_forward.1} parent=11 // pred_check_branch
        %201 = sbr.rel (%p199) target = $region16
      $region15: #{net_mp_forward.1} parent=11 // pred_region
        _
      $region16: #{net_mp_forward.1} parent=11 // pred_fallthru
        _
      // Predicated region
      $region17: #{net_mp_forward.1} parent=11 // pred_check
        %p202 = pneg %p158
      $region18: #{net_mp_forward.1} parent=11 // pred_check_branch
        %204 = sbr.rel (%p202) target = $region20
      $region19: #{net_mp_forward.1} parent=11 // pred_region
        _
      $region20: #{net_mp_forward.1} parent=11 // pred_fallthru
        _
    $region12: #{net_mp_forward.1} parent=5 // pred_fallthru
      _
    %p205 = scmp.lt.s32.totalorder %s12, 2
    // Predicated region
    $region21: #{net_mp_forward.1} parent=5 // pred_check
      %p206 = pneg %p205
    $region22: #{net_mp_forward.1} parent=5 // pred_check_branch
      %208 = sbr.rel (%p206) target = $region24
    $region23: #{net_mp_forward.1} parent=5 // pred_region
      // Predicated region
      $region25: #{net_mp_forward.1} parent=23 // pred_check
        %p209 = pneg %p32
      $region26: #{net_mp_forward.1} parent=23 // pred_check_branch
        %211 = sbr.rel (%p209) target = $region28
      $region27: #{net_mp_forward.1} parent=23 // pred_region
        %p212 = scmp.lt.s32.totalorder %s12, 1
        %s213 = scalar_select %p212, %s12, 1
        %s214 = smul.addr %s213, 8
        %s215 = smul.addr %s214, 8
        %s216 = scalar_lea.vmem %s0, %s215
      $region28: #{net_mp_forward.1} parent=23 // pred_fallthru
        _
      // Predicated region
      $region29: #{net_mp_forward.1} parent=23 // pred_check
        %p217 = pneg %p58
      $region30: #{net_mp_forward.1} parent=23 // pred_check_branch
        %219 = sbr.rel (%p217) target = $region32
      $region31: #{net_mp_forward.1} parent=23 // pred_region
        %p220 = scmp.lt.s32.totalorder %s12, 1
        %s221 = scalar_select %p220, %s12, 1
        %s222 = smul.addr %s221, 16
        %s223 = smul.addr %s222, 8
        %s224 = scalar_lea.vmem %s1, %s223
      $region32: #{net_mp_forward.1} parent=23 // pred_fallthru
        _
      // Predicated region
      $region33: #{net_mp_forward.1} parent=23 // pred_check
        %p225 = pneg %p84
      $region34: #{net_mp_forward.1} parent=23 // pred_check_branch
        %227 = sbr.rel (%p225) target = $region36
      $region35: #{net_mp_forward.1} parent=23 // pred_region
        %p228 = scmp.lt.s32.totalorder %s12, 1
        %s229 = scalar_select %p228, %s12, 1
        %s230 = smul.addr %s229, 16
        %s231 = smul.addr %s230, 8
        %s232 = scalar_lea.vmem %s2, %s231
      $region36: #{net_mp_forward.1} parent=23 // pred_fallthru
        _
      // Predicated region
      $region37: #{net_mp_forward.1} parent=23 // pred_check
        %p233 = pneg %p110
      $region38: #{net_mp_forward.1} parent=23 // pred_check_branch
        %235 = sbr.rel (%p233) target = $region40
      $region39: #{net_mp_forward.1} parent=23 // pred_region
        %p236 = scmp.lt.s32.totalorder %s12, 1
        %s237 = scalar_select %p236, %s12, 1
        %s238 = scalar_lea.vmem %s3, %s237
      $region40: #{net_mp_forward.1} parent=23 // pred_fallthru
        _
    $region24: #{net_mp_forward.1} parent=5 // pred_fallthru
      _
    %p239 = scmp.le.s32.totalorder 1, %s12
    %p240 = scmp.lt.s32.totalorder %s12, 3
    %p241 = pnand %p239, %p240
    %p242 = pneg %p241
    // Predicated region
    $region41: #{net_mp_forward.1} parent=5 // pred_check
      _
    $region42: #{net_mp_forward.1} parent=5 // pred_check_branch
      %244 = sbr.rel (%p241) target = $region44
    $region43: #{net_mp_forward.1} parent=5 // pred_region
      %s245 = ssub.s32 %s12, 1
      %p246 = scmp.lt.s32.totalorder %s17, 1
      %s247 = scalar_select %p246, %s17, 1
      %s248 = smul.addr %s247, 8
      %s249 = smul.addr %s248, 8
      %s250 = scalar_lea.vmem %s0, %s249
      %p251 = pneg %p38
      %p252 = pneg %p35
      %p253 = scmp.lt.s32.totalorder %s17, 1
      %s254 = scalar_select %p253, %s17, 1
      %s255 = smul.addr %s254, 16
      %s256 = smul.addr %s255, 8
      %s257 = scalar_lea.vmem %s1, %s256
      %p258 = pneg %p64
      %p259 = pneg %p61
      %p260 = scmp.lt.s32.totalorder %s17, 1
      %s261 = scalar_select %p260, %s17, 1
      %s262 = smul.addr %s261, 16
      %s263 = smul.addr %s262, 8
      %s264 = scalar_lea.vmem %s2, %s263
      %p265 = pneg %p90
      %p266 = pneg %p87
      %p267 = scmp.lt.s32.totalorder %s17, 1
      %s268 = scalar_select %p267, %s17, 1
      %s269 = scalar_lea.vmem %s3, %s268
      %p270 = pneg %p116
      %p271 = pneg %p113
      %p272 = pneg %p137
      %p273 = pneg %p134
      %p274 = pneg %p158
      %p275 = pneg %p155
      %p276 = pneg %p184
      %p277 = pneg %p181
      %p278 = scmp.lt.s32.totalorder %s17, 1
      %s279 = scalar_select %p278, %s17, 1
      %s280 = scalar_lea.vmem %s6, %s279
      %p281 = scmp.lt.s32.totalorder %s17, 1
      %s282 = scalar_select %p281, %s17, 1
      %s283 = smul.addr %s282, 8
      %s284 = smul.addr %s283, 8
      %s285 = scalar_lea.vmem %s0, %s284
      %p286 = scmp.lt.s32.totalorder %s17, 1
      %s287 = scalar_select %p286, %s17, 1
      %s288 = smul.addr %s287, 16
      %s289 = smul.addr %s288, 8
      %s290 = scalar_lea.vmem %s1, %s289
      %p291 = scmp.lt.s32.totalorder %s17, 1
      %s292 = scalar_select %p291, %s17, 1
      %s293 = smul.addr %s292, 16
      %s294 = smul.addr %s293, 8
      %s295 = scalar_lea.vmem %s2, %s294
      %p296 = scmp.lt.s32.totalorder %s17, 1
      %s297 = scalar_select %p296, %s17, 1
      %s298 = scalar_lea.vmem %s3, %s297
      %p299 = scmp.lt.s32.totalorder %s17, 1
      %s300 = scalar_select %p299, %s17, 1
      %s301 = scalar_lea.vmem %s6, %s300
      %v302 = vld [vmem:[%s285] sm:$0xff]
      %v303 = vld [vmem:[%s285 + $0x8] sm:$0xff]
      %v304 = vld [vmem:[%s285 + $0x10] sm:$0xff]
      %v305 = vld [vmem:[%s285 + $0x18] sm:$0xff]
      %v306 = vld [vmem:[%s285 + $0x20] sm:$0xff]
      %v307 = vld [vmem:[%s285 + $0x28] sm:$0xff]
      %v308 = vld [vmem:[%s285 + $0x30] sm:$0xff]
      %v309 = vld [vmem:[%s285 + $0x38] sm:$0xff]
      %v310 = vld [vmem:[%s290] sm:$0xff]
      %v311 = vld [vmem:[%s290 + $0x8] sm:$0xff]
      %v312 = vld [vmem:[%s290 + $0x10] sm:$0xff]
      %v313 = vld [vmem:[%s290 + $0x18] sm:$0xff]
      %v314 = vld [vmem:[%s290 + $0x20] sm:$0xff]
      %v315 = vld [vmem:[%s290 + $0x28] sm:$0xff]
      %v316 = vld [vmem:[%s290 + $0x30] sm:$0xff]
      %v317 = vld [vmem:[%s290 + $0x38] sm:$0xff]
      %v318 = vld [vmem:[%s290 + $0x40] sm:$0xff]
      %v319 = vld [vmem:[%s290 + $0x48] sm:$0xff]
      %v320 = vld [vmem:[%s290 + $0x50] sm:$0xff]
      %v321 = vld [vmem:[%s290 + $0x58] sm:$0xff]
      %v322 = vld [vmem:[%s290 + $0x60] sm:$0xff]
      %v323 = vld [vmem:[%s290 + $0x68] sm:$0xff]
      %v324 = vld [vmem:[%s290 + $0x70] sm:$0xff]
      %v325 = vld [vmem:[%s290 + $0x78] sm:$0xff]
      %v326 = vld [vmem:[%s295] sm:$0xff]
      %v327 = vld [vmem:[%s295 + $0x8] sm:$0xff]
      %v328 = vld [vmem:[%s295 + $0x10] sm:$0xff]
      %v329 = vld [vmem:[%s295 + $0x18] sm:$0xff]
      %v330 = vld [vmem:[%s295 + $0x20] sm:$0xff]
      %v331 = vld [vmem:[%s295 + $0x28] sm:$0xff]
      %v332 = vld [vmem:[%s295 + $0x30] sm:$0xff]
      %v333 = vld [vmem:[%s295 + $0x38] sm:$0xff]
      %v334 = vld [vmem:[%s295 + $0x40] sm:$0xff]
      %v335 = vld [vmem:[%s295 + $0x48] sm:$0xff]
      %v336 = vld [vmem:[%s295 + $0x50] sm:$0xff]
      %v337 = vld [vmem:[%s295 + $0x58] sm:$0xff]
      %v338 = vld [vmem:[%s295 + $0x60] sm:$0xff]
      %v339 = vld [vmem:[%s295 + $0x68] sm:$0xff]
      %v340 = vld [vmem:[%s295 + $0x70] sm:$0xff]
      %v341 = vld [vmem:[%s295 + $0x78] sm:$0xff]
      %v342 = vld [vmem:[%s298] sm:$0x1]
      %v343 = vlaneseq
      %v344 = vand.u32 %v343, 127
      %345 = vset.pattern.permute.xlu0 0
      %346 = vperm.xlu0 %345, %v326
      %v347 = vpop.permute.xlu0 %346
      %348 = vset.pattern.permute.xlu0 0
      %349 = vperm.xlu0 %348, %v327
      %v350 = vpop.permute.xlu0 %349
      %351 = vset.pattern.permute.xlu0 0
      %352 = vperm.xlu0 %351, %v328
      %v353 = vpop.permute.xlu0 %352
      %354 = vset.pattern.permute.xlu0 0
      %355 = vperm.xlu0 %354, %v329
      %v356 = vpop.permute.xlu0 %355
      %357 = vset.pattern.permute.xlu0 0
      %358 = vperm.xlu0 %357, %v330
      %v359 = vpop.permute.xlu0 %358
      %360 = vset.pattern.permute.xlu0 0
      %361 = vperm.xlu0 %360, %v331
      %v362 = vpop.permute.xlu0 %361
      %363 = vset.pattern.permute.xlu0 0
      %364 = vperm.xlu0 %363, %v332
      %v365 = vpop.permute.xlu0 %364
      %366 = vset.pattern.permute.xlu0 0
      %367 = vperm.xlu0 %366, %v333
      %v368 = vpop.permute.xlu0 %367
      %369 = vset.pattern.permute.xlu0 0
      %370 = vperm.xlu0 %369, %v334
      %v371 = vpop.permute.xlu0 %370
      %372 = vset.pattern.permute.xlu0 0
      %373 = vperm.xlu0 %372, %v335
      %v374 = vpop.permute.xlu0 %373
      %375 = vset.pattern.permute.xlu0 0
      %376 = vperm.xlu0 %375, %v336
      %v377 = vpop.permute.xlu0 %376
      %378 = vset.pattern.permute.xlu0 0
      %379 = vperm.xlu0 %378, %v337
      %v380 = vpop.permute.xlu0 %379
      %381 = vset.pattern.permute.xlu0 0
      %382 = vperm.xlu0 %381, %v338
      %v383 = vpop.permute.xlu0 %382
      %384 = vset.pattern.permute.xlu0 0
      %385 = vperm.xlu0 %384, %v339
      %v386 = vpop.permute.xlu0 %385
      %387 = vset.pattern.permute.xlu0 0
      %388 = vperm.xlu0 %387, %v340
      %v389 = vpop.permute.xlu0 %388
      %390 = vset.pattern.permute.xlu0 0
      %391 = vperm.xlu0 %390, %v341
      %v392 = vpop.permute.xlu0 %391
      %vm393 = vcmp.eq.s32.totalorder %v347, %v344
      %vm394 = vcmp.eq.s32.totalorder %v350, %v344
      %vm395 = vcmp.eq.s32.totalorder %v353, %v344
      %vm396 = vcmp.eq.s32.totalorder %v356, %v344
      %vm397 = vcmp.eq.s32.totalorder %v359, %v344
      %vm398 = vcmp.eq.s32.totalorder %v362, %v344
      %vm399 = vcmp.eq.s32.totalorder %v365, %v344
      %vm400 = vcmp.eq.s32.totalorder %v368, %v344
      %vm401 = vcmp.eq.s32.totalorder %v371, %v344
      %vm402 = vcmp.eq.s32.totalorder %v374, %v344
      %vm403 = vcmp.eq.s32.totalorder %v377, %v344
      %vm404 = vcmp.eq.s32.totalorder %v380, %v344
      %vm405 = vcmp.eq.s32.totalorder %v383, %v344
      %vm406 = vcmp.eq.s32.totalorder %v386, %v344
      %vm407 = vcmp.eq.s32.totalorder %v389, %v344
      %vm408 = vcmp.eq.s32.totalorder %v392, %v344
      %v409 = vsel %vm393, 1, 0
      %v410 = vsel %vm394, 1, 0
      %v411 = vsel %vm395, 1, 0
      %v412 = vsel %vm396, 1, 0
      %v413 = vsel %vm397, 1, 0
      %v414 = vsel %vm398, 1, 0
      %v415 = vsel %vm399, 1, 0
      %v416 = vsel %vm400, 1, 0
      %v417 = vsel %vm401, 1, 0
      %v418 = vsel %vm402, 1, 0
      %v419 = vsel %vm403, 1, 0
      %v420 = vsel %vm404, 1, 0
      %v421 = vsel %vm405, 1, 0
      %v422 = vsel %vm406, 1, 0
      %v423 = vsel %vm407, 1, 0
      %v424 = vsel %vm408, 1, 0
      %v425 = vcvt.s32.f32 %v409
      %v426 = vcvt.s32.f32 %v410
      %v427 = vcvt.s32.f32 %v411
      %v428 = vcvt.s32.f32 %v412
      %v429 = vcvt.s32.f32 %v413
      %v430 = vcvt.s32.f32 %v414
      %v431 = vcvt.s32.f32 %v415
      %v432 = vcvt.s32.f32 %v416
      %v433 = vcvt.s32.f32 %v417
      %v434 = vcvt.s32.f32 %v418
      %v435 = vcvt.s32.f32 %v419
      %v436 = vcvt.s32.f32 %v420
      %v437 = vcvt.s32.f32 %v421
      %v438 = vcvt.s32.f32 %v422
      %v439 = vcvt.s32.f32 %v423
      %v440 = vcvt.s32.f32 %v424
      %v441 = vlaneseq
      %v442 = vshrl.u32 %v441, 7
      %v443 = vadd.s32 %v442, 8
      %v444 = vadd.s32 %v442, 16
      %v445 = vadd.s32 %v442, 24
      %v446 = vadd.s32 %v442, 32
      %v447 = vadd.s32 %v442, 40
      %v448 = vadd.s32 %v442, 48
      %v449 = vadd.s32 %v442, 56
      %v450 = vlaneseq
      %v451 = vshrl.u32 %v450, 7
      %v452 = vsub.s32 0, %v451
      %v453 = vrot.slane %v342, %v452
      %vm454 = vcmp.eq.s32.totalorder %v453, %v442
      %vm455 = vcmp.eq.s32.totalorder %v453, %v443
      %vm456 = vcmp.eq.s32.totalorder %v453, %v444
      %vm457 = vcmp.eq.s32.totalorder %v453, %v445
      %vm458 = vcmp.eq.s32.totalorder %v453, %v446
      %vm459 = vcmp.eq.s32.totalorder %v453, %v447
      %vm460 = vcmp.eq.s32.totalorder %v453, %v448
      %vm461 = vcmp.eq.s32.totalorder %v453, %v449
      %v462 = vsel %vm454, 1, 0
      %v463 = vsel %vm455, 1, 0
      %v464 = vsel %vm456, 1, 0
      %v465 = vsel %vm457, 1, 0
      %v466 = vsel %vm458, 1, 0
      %v467 = vsel %vm459, 1, 0
      %v468 = vsel %vm460, 1, 0
      %v469 = vsel %vm461, 1, 0
      %v470 = vcvt.s32.f32 %v462
      %v471 = vcvt.s32.f32 %v463
      %v472 = vcvt.s32.f32 %v464
      %v473 = vcvt.s32.f32 %v465
      %v474 = vcvt.s32.f32 %v466
      %v475 = vcvt.s32.f32 %v467
      %v476 = vcvt.s32.f32 %v468
      %v477 = vcvt.s32.f32 %v469
      %v478 = vld [vmem:[%s4] sm:$0xff]
      %v479 = vld [vmem:[%s4 + $0x8] sm:$0xff]
      %v480 = vld [vmem:[%s4 + $0x10] sm:$0xff]
      %v481 = vld [vmem:[%s4 + $0x18] sm:$0xff]
      %v482 = vld [vmem:[%s4 + $0x20] sm:$0xff]
      %v483 = vld [vmem:[%s4 + $0x28] sm:$0xff]
      %v484 = vld [vmem:[%s4 + $0x30] sm:$0xff]
      %v485 = vld [vmem:[%s4 + $0x38] sm:$0xff]
      %v486 = vld [vmem:[%s4 + $0x40] sm:$0xff]
      %v487 = vld [vmem:[%s4 + $0x48] sm:$0xff]
      %v488 = vld [vmem:[%s4 + $0x50] sm:$0xff]
      %v489 = vld [vmem:[%s4 + $0x58] sm:$0xff]
      %v490 = vld [vmem:[%s4 + $0x60] sm:$0xff]
      %v491 = vld [vmem:[%s4 + $0x68] sm:$0xff]
      %v492 = vld [vmem:[%s4 + $0x70] sm:$0xff]
      %v493 = vld [vmem:[%s4 + $0x78] sm:$0xff]
      %v494 = vld [vmem:[%s4 + $0x80] sm:$0xff]
      %v495 = vld [vmem:[%s4 + $0x88] sm:$0xff]
      %v496 = vld [vmem:[%s4 + $0x90] sm:$0xff]
      %v497 = vld [vmem:[%s4 + $0x98] sm:$0xff]
      %v498 = vld [vmem:[%s4 + $0xa0] sm:$0xff]
      %v499 = vld [vmem:[%s4 + $0xa8] sm:$0xff]
      %v500 = vld [vmem:[%s4 + $0xb0] sm:$0xff]
      %v501 = vld [vmem:[%s4 + $0xb8] sm:$0xff]
      %v502 = vld [vmem:[%s4 + $0xc0] sm:$0xff]
      %v503 = vld [vmem:[%s4 + $0xc8] sm:$0xff]
      %v504 = vld [vmem:[%s4 + $0xd0] sm:$0xff]
      %v505 = vld [vmem:[%s4 + $0xd8] sm:$0xff]
      %v506 = vld [vmem:[%s4 + $0xe0] sm:$0xff]
      %v507 = vld [vmem:[%s4 + $0xe8] sm:$0xff]
      %v508 = vld [vmem:[%s4 + $0xf0] sm:$0xff]
      %v509 = vld [vmem:[%s4 + $0xf8] sm:$0xff]
      %v510 = vld [vmem:[%s4 + $0x100] sm:$0xff]
      %v511 = vld [vmem:[%s4 + $0x108] sm:$0xff]
      %v512 = vld [vmem:[%s4 + $0x110] sm:$0xff]
      %v513 = vld [vmem:[%s4 + $0x118] sm:$0xff]
      %v514 = vld [vmem:[%s4 + $0x120] sm:$0xff]
      %v515 = vld [vmem:[%s4 + $0x128] sm:$0xff]
      %v516 = vld [vmem:[%s4 + $0x130] sm:$0xff]
      %v517 = vld [vmem:[%s4 + $0x138] sm:$0xff]
      %v518 = vld [vmem:[%s4 + $0x140] sm:$0xff]
      %v519 = vld [vmem:[%s4 + $0x148] sm:$0xff]
      %v520 = vld [vmem:[%s4 + $0x150] sm:$0xff]
      %v521 = vld [vmem:[%s4 + $0x158] sm:$0xff]
      %v522 = vld [vmem:[%s4 + $0x160] sm:$0xff]
      %v523 = vld [vmem:[%s4 + $0x168] sm:$0xff]
      %v524 = vld [vmem:[%s4 + $0x170] sm:$0xff]
      %v525 = vld [vmem:[%s4 + $0x178] sm:$0xff]
      %v526 = vld [vmem:[%s4 + $0x180] sm:$0xff]
      %v527 = vld [vmem:[%s4 + $0x188] sm:$0xff]
      %v528 = vld [vmem:[%s5] sm:$0xff]
      %v529 = vld [vmem:[%s5 + $0x8] sm:$0xff]
      %v530 = vld [vmem:[%s5 + $0x10] sm:$0xff]
      %v531 = vld [vmem:[%s5 + $0x18] sm:$0xff]
      %v532 = vld [vmem:[%s5 + $0x20] sm:$0xff]
      %v533 = vld [vmem:[%s5 + $0x28] sm:$0xff]
      %v534 = vld [vmem:[%s5 + $0x30] sm:$0xff]
      %v535 = vld [vmem:[%s5 + $0x38] sm:$0xff]
      %v536 = vld [vmem:[%s5 + $0x40] sm:$0xff]
      %v537 = vld [vmem:[%s5 + $0x48] sm:$0xff]
      %v538 = vld [vmem:[%s5 + $0x50] sm:$0xff]
      %v539 = vld [vmem:[%s5 + $0x58] sm:$0xff]
      %v540 = vld [vmem:[%s5 + $0x60] sm:$0xff]
      %v541 = vld [vmem:[%s5 + $0x68] sm:$0xff]
      %vm542 = vcmask 64512
      %v544 = vsel %vm542, %v310, 0
      %v547 = vsel %vm542, %v311, 0
      %v550 = vsel %vm542, %v312, 0
      %v553 = vsel %vm542, %v313, 0
      %v556 = vsel %vm542, %v314, 0
      %v559 = vsel %vm542, %v315, 0
      %v562 = vsel %vm542, %v316, 0
      %v565 = vsel %vm542, %v317, 0
      %v568 = vsel %vm542, %v318, 0
      %v571 = vsel %vm542, %v319, 0
      %v574 = vsel %vm542, %v320, 0
      %v577 = vsel %vm542, %v321, 0
      %v580 = vsel %vm542, %v322, 0
      %v583 = vsel %vm542, %v323, 0
      %v586 = vsel %vm542, %v324, 0
      %v589 = vsel %vm542, %v325, 0
      %591 = vmatprep.subr.mxu0 %v529
      %592 = vmatpush1.msra.mxu0 %v528
      %593 = vmatprep.subr.mxu0 0.0
      %594 = vmatpush1.msra.mxu0 0.0
      %595 = vmatprep.subr.mxu0 0.0
      %596 = vmatpush1.msra.mxu0 0.0
      %597 = vmatprep.subr.mxu0 0.0
      %598 = vmatpush1.msra.mxu0 0.0
      %599 = vmatprep.subr.mxu0 0.0
      %600 = vmatpush1.msra.mxu0 0.0
      %601 = vmatprep.subr.mxu0 0.0
      %602 = vmatpush1.msra.mxu0 0.0
      %603 = vmatprep.subr.mxu0 0.0
      %604 = vmatpush1.msra.mxu0 0.0
      %605 = vmatprep.subr.mxu0 0.0
      %606 = vmatpush1.msra.mxu0 0.0
      %607 = vmatprep.subr.mxu0 0.0
      %608 = vmatpush1.msra.mxu0 0.0
      %609 = vmatprep.subr.mxu0 0.0
      %610 = vmatpush1.msra.mxu0 0.0
      %611 = vmatprep.subr.mxu0 0.0
      %612 = vmatpush1.msra.mxu0 0.0
      %613 = vmatprep.subr.mxu0 0.0
      %614 = vmatpush1.msra.mxu0 0.0
      %615 = vmatprep.subr.mxu0 0.0
      %616 = vmatpush1.msra.mxu0 0.0
      %617 = vmatprep.subr.mxu0 0.0
      %618 = vmatpush1.msra.mxu0 0.0
      %619 = vmatprep.subr.mxu0 0.0
      %620 = vmatpush1.msra.mxu0 0.0
      %621 = vmatprep.subr.mxu0 0.0
      %622 = vmatpush1.msra.mxu0 0.0
      %623 = vmatprep.subr.mxu0 0.0
      %624 = vmatpush1.msra.mxu0 0.0
      %625 = vmatprep.subr.mxu0 0.0
      %626 = vmatpush1.msra.mxu0 0.0
      %627 = vmatprep.subr.mxu0 0.0
      %628 = vmatpush1.msra.mxu0 0.0
      %629 = vmatprep.subr.mxu0 0.0
      %630 = vmatpush1.msra.mxu0 0.0
      %631 = vmatprep.subr.mxu0 0.0
      %632 = vmatpush1.msra.mxu0 0.0
      %633 = vmatprep.subr.mxu0 0.0
      %634 = vmatpush1.msra.mxu0 0.0
      %635 = vmatprep.subr.mxu0 0.0
      %636 = vmatpush1.msra.mxu0 0.0
      %637 = vmatprep.subr.mxu0 0.0
      %638 = vmatpush1.msra.mxu0 0.0
      %639 = vmatprep.subr.mxu0 0.0
      %640 = vmatpush1.msra.mxu0 0.0
      %641 = vmatprep.subr.mxu0 0.0
      %642 = vmatpush1.msra.mxu0 0.0
      %643 = vmatprep.subr.mxu0 0.0
      %644 = vmatpush1.msra.mxu0 0.0
      %645 = vmatprep.subr.mxu0 0.0
      %646 = vmatpush1.msra.mxu0 0.0
      %647 = vmatprep.subr.mxu0 0.0
      %648 = vmatpush1.msra.mxu0 0.0
      %649 = vmatprep.subr.mxu0 0.0
      %650 = vmatpush1.msra.mxu0 0.0
      %651 = vmatprep.subr.mxu0 0.0
      %652 = vmatpush1.msra.mxu0 0.0
      %653 = vmatprep.subr.mxu0 0.0
      %654 = vmatpush1.msra.mxu0 0.0
      %655 = vmatprep.mubr.f32.mxu0 0.0
      %656 = vmatmul.mubr.f32.gmra.mrb[0].mxu0 %v544
      %v657 = vpop.f32.mrb[0].mxu0
      %v658 = vadd.f32 0.0, %v657
      %v659 = vpop.f32.mrb[0].mxu0
      %v660 = vadd.f32 0.0, %v659
      %661 = vmatprep.mubr.f32.mxu0 0.0
      %662 = vmatmul.mubr.f32.gmra.mrb[0].mxu0 %v547
      %v663 = vpop.f32.mrb[0].mxu0
      %v664 = vadd.f32 0.0, %v663
      %v665 = vpop.f32.mrb[0].mxu0
      %v666 = vadd.f32 0.0, %v665
      %667 = vmatprep.mubr.f32.mxu0 0.0
      %668 = vmatmul.mubr.f32.gmra.mrb[0].mxu0 %v550
      %v669 = vpop.f32.mrb[0].mxu0
      %v670 = vadd.f32 0.0, %v669
      %v671 = vpop.f32.mrb[0].mxu0
      %v672 = vadd.f32 0.0, %v671
      %673 = vmatprep.mubr.f32.mxu0 0.0
      %674 = vmatmul.mubr.f32.gmra.mrb[0].mxu0 %v553
      %v675 = vpop.f32.mrb[0].mxu0
      %v676 = vadd.f32 0.0, %v675
      %v677 = vpop.f32.mrb[0].mxu0
      %v678 = vadd.f32 0.0, %v677
      %679 = vmatprep.mubr.f32.mxu0 0.0
      %680 = vmatmul.mubr.f32.gmra.mrb[0].mxu0 %v556
      %v681 = vpop.f32.mrb[0].mxu0
      %v682 = vadd.f32 0.0, %v681
      %v683 = vpop.f32.mrb[0].mxu0
      %v684 = vadd.f32 0.0, %v683
      %685 = vmatprep.mubr.f32.mxu0 0.0
      %686 = vmatmul.mubr.f32.gmra.mrb[0].mxu0 %v559
      %v687 = vpop.f32.mrb[0].mxu0
      %v688 = vadd.f32 0.0, %v687
      %v689 = vpop.f32.mrb[0].mxu0
      %v690 = vadd.f32 0.0, %v689
      %691 = vmatprep.mubr.f32.mxu0 0.0
      %692 = vmatmul.mubr.f32.gmra.mrb[0].mxu0 %v562
      %v693 = vpop.f32.mrb[0].mxu0
      %v694 = vadd.f32 0.0, %v693
      %v695 = vpop.f32.mrb[0].mxu0
      %v696 = vadd.f32 0.0, %v695
      %697 = vmatprep.mubr.f32.mxu0 0.0
      %698 = vmatmul.mubr.f32.gmra.mrb[0].mxu0 %v565
      %v699 = vpop.f32.mrb[0].mxu0
      %v700 = vadd.f32 0.0, %v699
      %v701 = vpop.f32.mrb[0].mxu0
      %v702 = vadd.f32 0.0, %v701
      %703 = vmatprep.mubr.f32.mxu0 0.0
      %704 = vmatmul.mubr.f32.gmra.mrb[0].mxu0 %v568
      %v705 = vpop.f32.mrb[0].mxu0
      %v706 = vadd.f32 0.0, %v705
      %v707 = vpop.f32.mrb[0].mxu0
      %v708 = vadd.f32 0.0, %v707
      %709 = vmatprep.mubr.f32.mxu0 0.0
      %710 = vmatmul.mubr.f32.gmra.mrb[0].mxu0 %v571
      %v711 = vpop.f32.mrb[0].mxu0
      %v712 = vadd.f32 0.0, %v711
      %v713 = vpop.f32.mrb[0].mxu0
      %v714 = vadd.f32 0.0, %v713
      %715 = vmatprep.mubr.f32.mxu0 0.0
      %716 = vmatmul.mubr.f32.gmra.mrb[0].mxu0 %v574
      %v717 = vpop.f32.mrb[0].mxu0
      %v718 = vadd.f32 0.0, %v717
      %v719 = vpop.f32.mrb[0].mxu0
      %v720 = vadd.f32 0.0, %v719
      %721 = vmatprep.mubr.f32.mxu0 0.0
      %722 = vmatmul.mubr.f32.gmra.mrb[0].mxu0 %v577
      %v723 = vpop.f32.mrb[0].mxu0
      %v724 = vadd.f32 0.0, %v723
      %v725 = vpop.f32.mrb[0].mxu0
      %v726 = vadd.f32 0.0, %v725
      %727 = vmatprep.mubr.f32.mxu0 0.0
      %728 = vmatmul.mubr.f32.gmra.mrb[0].mxu0 %v580
      %v729 = vpop.f32.mrb[0].mxu0
      %v730 = vadd.f32 0.0, %v729
      %v731 = vpop.f32.mrb[0].mxu0
      %v732 = vadd.f32 0.0, %v731
      %733 = vmatprep.mubr.f32.mxu0 0.0
      %734 = vmatmul.mubr.f32.gmra.mrb[0].mxu0 %v583
      %v735 = vpop.f32.mrb[0].mxu0
      %v736 = vadd.f32 0.0, %v735
      %v737 = vpop.f32.mrb[0].mxu0
      %v738 = vadd.f32 0.0, %v737
      %739 = vmatprep.mubr.f32.mxu0 0.0
      %740 = vmatmul.mubr.f32.gmra.mrb[0].mxu0 %v586
      %v741 = vpop.f32.mrb[0].mxu0
      %v742 = vadd.f32 0.0, %v741
      %v743 = vpop.f32.mrb[0].mxu0
      %v744 = vadd.f32 0.0, %v743
      %745 = vmatprep.mubr.f32.mxu0 0.0
      %746 = vmatmul.mubr.f32.gmra.mrb[0].mxu0 %v589
      %v747 = vpop.f32.mrb[0].mxu0
      %v748 = vadd.f32 0.0, %v747
      %v749 = vpop.f32.mrb[0].mxu0
      %v750 = vadd.f32 0.0, %v749
      %751 = vdwg.mxu0
      %752 = vmatprep.subr.mxu0 %v533
      %753 = vmatpush1.msra.mxu0 %v532
      %754 = vmatprep.subr.mxu0 0.0
      %755 = vmatpush1.msra.mxu0 0.0
      %756 = vmatprep.subr.mxu0 0.0
      %757 = vmatpush1.msra.mxu0 0.0
      %758 = vmatprep.subr.mxu0 0.0
      %759 = vmatpush1.msra.mxu0 0.0
      %760 = vmatprep.subr.mxu0 0.0
      %761 = vmatpush1.msra.mxu0 0.0
      %762 = vmatprep.subr.mxu0 0.0
      %763 = vmatpush1.msra.mxu0 0.0
      %764 = vmatprep.subr.mxu0 0.0
      %765 = vmatpush1.msra.mxu0 0.0
      %766 = vmatprep.subr.mxu0 0.0
      %767 = vmatpush1.msra.mxu0 0.0
      %768 = vmatprep.subr.mxu0 0.0
      %769 = vmatpush1.msra.mxu0 0.0
      %770 = vmatprep.subr.mxu0 0.0
      %771 = vmatpush1.msra.mxu0 0.0
      %772 = vmatprep.subr.mxu0 0.0
      %773 = vmatpush1.msra.mxu0 0.0
      %774 = vmatprep.subr.mxu0 0.0
      %775 = vmatpush1.msra.mxu0 0.0
      %776 = vmatprep.subr.mxu0 0.0
      %777 = vmatpush1.msra.mxu0 0.0
      %778 = vmatprep.subr.mxu0 0.0
      %779 = vmatpush1.msra.mxu0 0.0
      %780 = vmatprep.subr.mxu0 0.0
      %781 = vmatpush1.msra.mxu0 0.0
      %782 = vmatprep.subr.mxu0 0.0
      %783 = vmatpush1.msra.mxu0 0.0
      %784 = vmatprep.subr.mxu0 0.0
      %785 = vmatpush1.msra.mxu0 0.0
      %786 = vmatprep.subr.mxu0 0.0
      %787 = vmatpush1.msra.mxu0 0.0
      %788 = vmatprep.subr.mxu0 0.0
      %789 = vmatpush1.msra.mxu0 0.0
      %790 = vmatprep.subr.mxu0 0.0
      %791 = vmatpush1.msra.mxu0 0.0
      %792 = vmatprep.subr.mxu0 0.0
      %793 = vmatpush1.msra.mxu0 0.0
      %794 = vmatprep.subr.mxu0 0.0
      %795 = vmatpush1.msra.mxu0 0.0
      %796 = vmatprep.subr.mxu0 0.0
      %797 = vmatpush1.msra.mxu0 0.0
      %798 = vmatprep.subr.mxu0 0.0
      %799 = vmatpush1.msra.mxu0 0.0
      %800 = vmatprep.subr.mxu0 0.0
      %801 = vmatpush1.msra.mxu0 0.0
      %802 = vmatprep.subr.mxu0 0.0
      %803 = vmatpush1.msra.mxu0 0.0
      %804 = vmatprep.subr.mxu0 0.0
      %805 = vmatpush1.msra.mxu0 0.0
      %806 = vmatprep.subr.mxu0 0.0
      %807 = vmatpush1.msra.mxu0 0.0
      %808 = vmatprep.subr.mxu0 0.0
      %809 = vmatpush1.msra.mxu0 0.0
      %810 = vmatprep.subr.mxu0 0.0
      %811 = vmatpush1.msra.mxu0 0.0
      %812 = vmatprep.subr.mxu0 0.0
      %813 = vmatpush1.msra.mxu0 0.0
      %814 = vmatprep.subr.mxu0 0.0
      %815 = vmatpush1.msra.mxu0 0.0
      %816 = vmatprep.mubr.f32.mxu0 0.0
      %817 = vmatmul.mubr.f32.gmra.mrb[0].mxu0 %v544
      %v818 = vpop.f32.mrb[0].mxu0
      %v819 = vadd.f32 0.0, %v818
      %v820 = vpop.f32.mrb[0].mxu0
      %v821 = vadd.f32 0.0, %v820
      %822 = vmatprep.mubr.f32.mxu0 0.0
      %823 = vmatmul.mubr.f32.gmra.mrb[0].mxu0 %v547
      %v824 = vpop.f32.mrb[0].mxu0
      %v825 = vadd.f32 0.0, %v824
      %v826 = vpop.f32.mrb[0].mxu0
      %v827 = vadd.f32 0.0, %v826
      %828 = vmatprep.mubr.f32.mxu0 0.0
      %829 = vmatmul.mubr.f32.gmra.mrb[0].mxu0 %v550
      %v830 = vpop.f32.mrb[0].mxu0
      %v831 = vadd.f32 0.0, %v830
      %v832 = vpop.f32.mrb[0].mxu0
      %v833 = vadd.f32 0.0, %v832
      %834 = vmatprep.mubr.f32.mxu0 0.0
      %835 = vmatmul.mubr.f32.gmra.mrb[0].mxu0 %v553
      %v836 = vpop.f32.mrb[0].mxu0
      %v837 = vadd.f32 0.0, %v836
      %v838 = vpop.f32.mrb[0].mxu0
      %v839 = vadd.f32 0.0, %v838
      %840 = vmatprep.mubr.f32.mxu0 0.0
      %841 = vmatmul.mubr.f32.gmra.mrb[0].mxu0 %v556
      %v842 = vpop.f32.mrb[0].mxu0
      %v843 = vadd.f32 0.0, %v842
      %v844 = vpop.f32.mrb[0].mxu0
      %v845 = vadd.f32 0.0, %v844
      %846 = vmatprep.mubr.f32.mxu0 0.0
      %847 = vmatmul.mubr.f32.gmra.mrb[0].mxu0 %v559
      %v848 = vpop.f32.mrb[0].mxu0
      %v849 = vadd.f32 0.0, %v848
      %v850 = vpop.f32.mrb[0].mxu0
      %v851 = vadd.f32 0.0, %v850
      %852 = vmatprep.mubr.f32.mxu0 0.0
      %853 = vmatmul.mubr.f32.gmra.mrb[0].mxu0 %v562
      %v854 = vpop.f32.mrb[0].mxu0
      %v855 = vadd.f32 0.0, %v854
      %v856 = vpop.f32.mrb[0].mxu0
      %v857 = vadd.f32 0.0, %v856
      %858 = vmatprep.mubr.f32.mxu0 0.0
      %859 = vmatmul.mubr.f32.gmra.mrb[0].mxu0 %v565
      %v860 = vpop.f32.mrb[0].mxu0
      %v861 = vadd.f32 0.0, %v860
      %v862 = vpop.f32.mrb[0].mxu0
      %v863 = vadd.f32 0.0, %v862
      %864 = vmatprep.mubr.f32.mxu0 0.0
      %865 = vmatmul.mubr.f32.gmra.mrb[0].mxu0 %v568
      %v866 = vpop.f32.mrb[0].mxu0
      %v867 = vadd.f32 0.0, %v866
      %v868 = vpop.f32.mrb[0].mxu0
      %v869 = vadd.f32 0.0, %v868
      %870 = vmatprep.mubr.f32.mxu0 0.0
      %871 = vmatmul.mubr.f32.gmra.mrb[0].mxu0 %v571
      %v872 = vpop.f32.mrb[0].mxu0
      %v873 = vadd.f32 0.0, %v872
      %v874 = vpop.f32.mrb[0].mxu0
      %v875 = vadd.f32 0.0, %v874
      %876 = vmatprep.mubr.f32.mxu0 0.0
      %877 = vmatmul.mubr.f32.gmra.mrb[0].mxu0 %v574
      %v878 = vpop.f32.mrb[0].mxu0
      %v879 = vadd.f32 0.0, %v878
      %v880 = vpop.f32.mrb[0].mxu0
      %v881 = vadd.f32 0.0, %v880
      %882 = vmatprep.mubr.f32.mxu0 0.0
      %883 = vmatmul.mubr.f32.gmra.mrb[0].mxu0 %v577
      %v884 = vpop.f32.mrb[0].mxu0
      %v885 = vadd.f32 0.0, %v884
      %v886 = vpop.f32.mrb[0].mxu0
      %v887 = vadd.f32 0.0, %v886
      %888 = vmatprep.mubr.f32.mxu0 0.0
      %889 = vmatmul.mubr.f32.gmra.mrb[0].mxu0 %v580
      %v890 = vpop.f32.mrb[0].mxu0
      %v891 = vadd.f32 0.0, %v890
      %v892 = vpop.f32.mrb[0].mxu0
      %v893 = vadd.f32 0.0, %v892
      %894 = vmatprep.mubr.f32.mxu0 0.0
      %895 = vmatmul.mubr.f32.gmra.mrb[0].mxu0 %v583
      %v896 = vpop.f32.mrb[0].mxu0
      %v897 = vadd.f32 0.0, %v896
      %v898 = vpop.f32.mrb[0].mxu0
      %v899 = vadd.f32 0.0, %v898
      %900 = vmatprep.mubr.f32.mxu0 0.0
      %901 = vmatmul.mubr.f32.gmra.mrb[0].mxu0 %v586
      %v902 = vpop.f32.mrb[0].mxu0
      %v903 = vadd.f32 0.0, %v902
      %v904 = vpop.f32.mrb[0].mxu0
      %v905 = vadd.f32 0.0, %v904
      %906 = vmatprep.mubr.f32.mxu0 0.0
      %907 = vmatmul.mubr.f32.gmra.mrb[0].mxu0 %v589
      %v908 = vpop.f32.mrb[0].mxu0
      %v909 = vadd.f32 0.0, %v908
      %v910 = vpop.f32.mrb[0].mxu0
      %v911 = vadd.f32 0.0, %v910
      %912 = vdwg.mxu0
      %vm913 = vcmask 523264
      %v915 = vsel %vm913, %v425, 0
      %v918 = vsel %vm913, %v426, 0
      %v921 = vsel %vm913, %v427, 0
      %v924 = vsel %vm913, %v428, 0
      %v927 = vsel %vm913, %v429, 0
      %v930 = vsel %vm913, %v430, 0
      %v933 = vsel %vm913, %v431, 0
      %v936 = vsel %vm913, %v432, 0
      %v939 = vsel %vm913, %v433, 0
      %v942 = vsel %vm913, %v434, 0
      %v945 = vsel %vm913, %v435, 0
      %v948 = vsel %vm913, %v436, 0
      %v951 = vsel %vm913, %v437, 0
      %v954 = vsel %vm913, %v438, 0
      %v957 = vsel %vm913, %v439, 0
      %v960 = vsel %vm913, %v440, 0
      %962 = vmatprep.subr.mxu0 0.0
      %963 = vmatpush1.msra.mxu0 %v302
      %964 = vmatprep.subr.mxu0 0.0
      %965 = vmatpush1.msra.mxu0 %v303
      %966 = vmatprep.subr.mxu0 0.0
      %967 = vmatpush1.msra.mxu0 %v304
      %968 = vmatprep.subr.mxu0 0.0
      %969 = vmatpush1.msra.mxu0 %v305
      %970 = vmatprep.subr.mxu0 0.0
      %971 = vmatpush1.msra.mxu0 %v306
      %972 = vmatprep.subr.mxu0 0.0
      %973 = vmatpush1.msra.mxu0 %v307
      %974 = vmatprep.subr.mxu0 0.0
      %975 = vmatpush1.msra.mxu0 %v308
      %976 = vmatprep.subr.mxu0 0.0
      %977 = vmatpush1.msra.mxu0 %v309
      %978 = vmatprep.subr.mxu0 0.0
      %979 = vmatpush1.msra.mxu0 0.0
      %980 = vmatprep.subr.mxu0 0.0
      %981 = vmatpush1.msra.mxu0 0.0
      %982 = vmatprep.subr.mxu0 0.0
      %983 = vmatpush1.msra.mxu0 0.0
      %984 = vmatprep.subr.mxu0 0.0
      %985 = vmatpush1.msra.mxu0 0.0
      %986 = vmatprep.subr.mxu0 0.0
      %987 = vmatpush1.msra.mxu0 0.0
      %988 = vmatprep.subr.mxu0 0.0
      %989 = vmatpush1.msra.mxu0 0.0
      %990 = vmatprep.subr.mxu0 0.0
      %991 = vmatpush1.msra.mxu0 0.0
      %992 = vmatprep.subr.mxu0 0.0
      %993 = vmatpush1.msra.mxu0 0.0
      %994 = vmatprep.subr.mxu0 0.0
      %995 = vmatpush1.msra.mxu0 0.0
      %996 = vmatprep.subr.mxu0 0.0
      %997 = vmatpush1.msra.mxu0 0.0
      %998 = vmatprep.subr.mxu0 0.0
      %999 = vmatpush1.msra.mxu0 0.0
      %1000 = vmatprep.subr.mxu0 0.0
      %1001 = vmatpush1.msra.mxu0 0.0
      %1002 = vmatprep.subr.mxu0 0.0
      %1003 = vmatpush1.msra.mxu0 0.0
      %1004 = vmatprep.subr.mxu0 0.0
      %1005 = vmatpush1.msra.mxu0 0.0
      %1006 = vmatprep.subr.mxu0 0.0
      %1007 = vmatpush1.msra.mxu0 0.0
      %1008 = vmatprep.subr.mxu0 0.0
      %1009 = vmatpush1.msra.mxu0 0.0
      %1010 = vmatprep.subr.mxu0 0.0
      %1011 = vmatpush1.msra.mxu0 0.0
      %1012 = vmatprep.subr.mxu0 0.0
      %1013 = vmatpush1.msra.mxu0 0.0
      %1014 = vmatprep.subr.mxu0 0.0
      %1015 = vmatpush1.msra.mxu0 0.0
      %1016 = vmatprep.subr.mxu0 0.0
      %1017 = vmatpush1.msra.mxu0 0.0
      %1018 = vmatprep.subr.mxu0 0.0
      %1019 = vmatpush1.msra.mxu0 0.0
      %1020 = vmatprep.subr.mxu0 0.0
      %1021 = vmatpush1.msra.mxu0 0.0
      %1022 = vmatprep.subr.mxu0 0.0
      %1023 = vmatpush1.msra.mxu0 0.0
      %1024 = vmatprep.subr.mxu0 0.0
      %1025 = vmatpush1.msra.mxu0 0.0
      %1026 = vmatprep.mubr.f32.mxu0 0.0
      %1027 = vmatmul.mubr.f32.gmra.mrb[0].mxu0 %v915
      %v1028 = vpop.f32.mrb[0].mxu0
      %v1029 = vadd.f32 0.0, %v1028
      %v1030 = vpop.f32.mrb[0].mxu0
      %1031 = vmatprep.mubr.f32.mxu0 0.0
      %1032 = vmatmul.mubr.f32.gmra.mrb[0].mxu0 %v918
      %v1033 = vpop.f32.mrb[0].mxu0
      %v1034 = vadd.f32 0.0, %v1033
      %v1035 = vpop.f32.mrb[0].mxu0
      %1036 = vmatprep.mubr.f32.mxu0 0.0
      %1037 = vmatmul.mubr.f32.gmra.mrb[0].mxu0 %v921
      %v1038 = vpop.f32.mrb[0].mxu0
      %v1039 = vadd.f32 0.0, %v1038
      %v1040 = vpop.f32.mrb[0].mxu0
      %1041 = vmatprep.mubr.f32.mxu0 0.0
      %1042 = vmatmul.mubr.f32.gmra.mrb[0].mxu0 %v924
      %v1043 = vpop.f32.mrb[0].mxu0
      %v1044 = vadd.f32 0.0, %v1043
      %v1045 = vpop.f32.mrb[0].mxu0
      %1046 = vmatprep.mubr.f32.mxu0 0.0
      %1047 = vmatmul.mubr.f32.gmra.mrb[0].mxu0 %v927
      %v1048 = vpop.f32.mrb[0].mxu0
      %v1049 = vadd.f32 0.0, %v1048
      %v1050 = vpop.f32.mrb[0].mxu0
      %1051 = vmatprep.mubr.f32.mxu0 0.0
      %1052 = vmatmul.mubr.f32.gmra.mrb[0].mxu0 %v930
      %v1053 = vpop.f32.mrb[0].mxu0
      %v1054 = vadd.f32 0.0, %v1053
      %v1055 = vpop.f32.mrb[0].mxu0
      %1056 = vmatprep.mubr.f32.mxu0 0.0
      %1057 = vmatmul.mubr.f32.gmra.mrb[0].mxu0 %v933
      %v1058 = vpop.f32.mrb[0].mxu0
      %v1059 = vadd.f32 0.0, %v1058
      %v1060 = vpop.f32.mrb[0].mxu0
      %1061 = vmatprep.mubr.f32.mxu0 0.0
      %1062 = vmatmul.mubr.f32.gmra.mrb[0].mxu0 %v936
      %v1063 = vpop.f32.mrb[0].mxu0
      %v1064 = vadd.f32 0.0, %v1063
      %v1065 = vpop.f32.mrb[0].mxu0
      %1066 = vmatprep.mubr.f32.mxu0 0.0
      %1067 = vmatmul.mubr.f32.gmra.mrb[0].mxu0 %v939
      %v1068 = vpop.f32.mrb[0].mxu0
      %v1069 = vadd.f32 0.0, %v1068
      %v1070 = vpop.f32.mrb[0].mxu0
      %1071 = vmatprep.mubr.f32.mxu0 0.0
      %1072 = vmatmul.mubr.f32.gmra.mrb[0].mxu0 %v942
      %v1073 = vpop.f32.mrb[0].mxu0
      %v1074 = vadd.f32 0.0, %v1073
      %v1075 = vpop.f32.mrb[0].mxu0
      %1076 = vmatprep.mubr.f32.mxu0 0.0
      %1077 = vmatmul.mubr.f32.gmra.mrb[0].mxu0 %v945
      %v1078 = vpop.f32.mrb[0].mxu0
      %v1079 = vadd.f32 0.0, %v1078
      %v1080 = vpop.f32.mrb[0].mxu0
      %1081 = vmatprep.mubr.f32.mxu0 0.0
      %1082 = vmatmul.mubr.f32.gmra.mrb[0].mxu0 %v948
      %v1083 = vpop.f32.mrb[0].mxu0
      %v1084 = vadd.f32 0.0, %v1083
      %v1085 = vpop.f32.mrb[0].mxu0
      %1086 = vmatprep.mubr.f32.mxu0 0.0
      %1087 = vmatmul.mubr.f32.gmra.mrb[0].mxu0 %v951
      %v1088 = vpop.f32.mrb[0].mxu0
      %v1089 = vadd.f32 0.0, %v1088
      %v1090 = vpop.f32.mrb[0].mxu0
      %1091 = vmatprep.mubr.f32.mxu0 0.0
      %1092 = vmatmul.mubr.f32.gmra.mrb[0].mxu0 %v954
      %v1093 = vpop.f32.mrb[0].mxu0
      %v1094 = vadd.f32 0.0, %v1093
      %v1095 = vpop.f32.mrb[0].mxu0
      %1096 = vmatprep.mubr.f32.mxu0 0.0
      %1097 = vmatmul.mubr.f32.gmra.mrb[0].mxu0 %v957
      %v1098 = vpop.f32.mrb[0].mxu0
      %v1099 = vadd.f32 0.0, %v1098
      %v1100 = vpop.f32.mrb[0].mxu0
      %1101 = vmatprep.mubr.f32.mxu0 0.0
      %1102 = vmatmul.mubr.f32.gmra.mrb[0].mxu0 %v960
      %v1103 = vpop.f32.mrb[0].mxu0
      %v1104 = vadd.f32 0.0, %v1103
      %v1105 = vpop.f32.mrb[0].mxu0
      %1106 = vdwg.mxu0
      %v1108 = vsel %vm542, %v1029, 0
      %v1111 = vsel %vm542, %v1034, 0
      %v1114 = vsel %vm542, %v1039, 0
      %v1117 = vsel %vm542, %v1044, 0
      %v1120 = vsel %vm542, %v1049, 0
      %v1123 = vsel %vm542, %v1054, 0
      %v1126 = vsel %vm542, %v1059, 0
      %v1129 = vsel %vm542, %v1064, 0
      %v1132 = vsel %vm542, %v1069, 0
      %v1135 = vsel %vm542, %v1074, 0
      %v1138 = vsel %vm542, %v1079, 0
      %v1141 = vsel %vm542, %v1084, 0
      %v1144 = vsel %vm542, %v1089, 0
      %v1147 = vsel %vm542, %v1094, 0
      %v1150 = vsel %vm542, %v1099, 0
      %v1153 = vsel %vm542, %v1104, 0
      %1155 = vmatprep.subr.mxu0 %v531
      %1156 = vmatpush1.msra.mxu0 %v530
      %1157 = vmatprep.subr.mxu0 0.0
      %1158 = vmatpush1.msra.mxu0 0.0
      %1159 = vmatprep.subr.mxu0 0.0
      %1160 = vmatpush1.msra.mxu0 0.0
      %1161 = vmatprep.subr.mxu0 0.0
      %1162 = vmatpush1.msra.mxu0 0.0
      %1163 = vmatprep.subr.mxu0 0.0
      %1164 = vmatpush1.msra.mxu0 0.0
      %1165 = vmatprep.subr.mxu0 0.0
      %1166 = vmatpush1.msra.mxu0 0.0
      %1167 = vmatprep.subr.mxu0 0.0
      %1168 = vmatpush1.msra.mxu0 0.0
      %1169 = vmatprep.subr.mxu0 0.0
      %1170 = vmatpush1.msra.mxu0 0.0
      %1171 = vmatprep.subr.mxu0 0.0
      %1172 = vmatpush1.msra.mxu0 0.0
      %1173 = vmatprep.subr.mxu0 0.0
      %1174 = vmatpush1.msra.mxu0 0.0
      %1175 = vmatprep.subr.mxu0 0.0
      %1176 = vmatpush1.msra.mxu0 0.0
      %1177 = vmatprep.subr.mxu0 0.0
      %1178 = vmatpush1.msra.mxu0 0.0
      %1179 = vmatprep.subr.mxu0 0.0
      %1180 = vmatpush1.msra.mxu0 0.0
      %1181 = vmatprep.subr.mxu0 0.0
      %1182 = vmatpush1.msra.mxu0 0.0
      %1183 = vmatprep.subr.mxu0 0.0
      %1184 = vmatpush1.msra.mxu0 0.0
      %1185 = vmatprep.subr.mxu0 0.0
      %1186 = vmatpush1.msra.mxu0 0.0
      %1187 = vmatprep.subr.mxu0 0.0
      %1188 = vmatpush1.msra.mxu0 0.0
      %1189 = vmatprep.subr.mxu0 0.0
      %1190 = vmatpush1.msra.mxu0 0.0
      %1191 = vmatprep.subr.mxu0 0.0
      %1192 = vmatpush1.msra.mxu0 0.0
      %1193 = vmatprep.subr.mxu0 0.0
      %1194 = vmatpush1.msra.mxu0 0.0
      %1195 = vmatprep.subr.mxu0 0.0
      %1196 = vmatpush1.msra.mxu0 0.0
      %1197 = vmatprep.subr.mxu0 0.0
      %1198 = vmatpush1.msra.mxu0 0.0
      %1199 = vmatprep.subr.mxu0 0.0
      %1200 = vmatpush1.msra.mxu0 0.0
      %1201 = vmatprep.subr.mxu0 0.0
      %1202 = vmatpush1.msra.mxu0 0.0
      %1203 = vmatprep.subr.mxu0 0.0
      %1204 = vmatpush1.msra.mxu0 0.0
      %1205 = vmatprep.subr.mxu0 0.0
      %1206 = vmatpush1.msra.mxu0 0.0
      %1207 = vmatprep.subr.mxu0 0.0
      %1208 = vmatpush1.msra.mxu0 0.0
      %1209 = vmatprep.subr.mxu0 0.0
      %1210 = vmatpush1.msra.mxu0 0.0
      %1211 = vmatprep.subr.mxu0 0.0
      %1212 = vmatpush1.msra.mxu0 0.0
      %1213 = vmatprep.subr.mxu0 0.0
      %1214 = vmatpush1.msra.mxu0 0.0
      %1215 = vmatprep.subr.mxu0 0.0
      %1216 = vmatpush1.msra.mxu0 0.0
      %1217 = vmatprep.subr.mxu0 0.0
      %1218 = vmatpush1.msra.mxu0 0.0
      %1219 = vmatprep.mubr.f32.mxu0 0.0
      %1220 = vmatmul.mubr.f32.gmra.mrb[0].mxu0 %v1108
      %v1221 = vpop.f32.mrb[0].mxu0
      %v1222 = vadd.f32 0.0, %v1221
      %v1223 = vpop.f32.mrb[0].mxu0
      %v1224 = vadd.f32 0.0, %v1223
      %1225 = vmatprep.mubr.f32.mxu0 0.0
      %1226 = vmatmul.mubr.f32.gmra.mrb[0].mxu0 %v1111
      %v1227 = vpop.f32.mrb[0].mxu0
      %v1228 = vadd.f32 0.0, %v1227
      %v1229 = vpop.f32.mrb[0].mxu0
      %v1230 = vadd.f32 0.0, %v1229
      %1231 = vmatprep.mubr.f32.mxu0 0.0
      %1232 = vmatmul.mubr.f32.gmra.mrb[0].mxu0 %v1114
      %v1233 = vpop.f32.mrb[0].mxu0
      %v1234 = vadd.f32 0.0, %v1233
      %v1235 = vpop.f32.mrb[0].mxu0
      %v1236 = vadd.f32 0.0, %v1235
      %1237 = vmatprep.mubr.f32.mxu0 0.0
      %1238 = vmatmul.mubr.f32.gmra.mrb[0].mxu0 %v1117
      %v1239 = vpop.f32.mrb[0].mxu0
      %v1240 = vadd.f32 0.0, %v1239
      %v1241 = vpop.f32.mrb[0].mxu0
      %v1242 = vadd.f32 0.0, %v1241
      %1243 = vmatprep.mubr.f32.mxu0 0.0
      %1244 = vmatmul.mubr.f32.gmra.mrb[0].mxu0 %v1120
      %v1245 = vpop.f32.mrb[0].mxu0
      %v1246 = vadd.f32 0.0, %v1245
      %v1247 = vpop.f32.mrb[0].mxu0
      %v1248 = vadd.f32 0.0, %v1247
      %1249 = vmatprep.mubr.f32.mxu0 0.0
      %1250 = vmatmul.mubr.f32.gmra.mrb[0].mxu0 %v1123
      %v1251 = vpop.f32.mrb[0].mxu0
      %v1252 = vadd.f32 0.0, %v1251
      %v1253 = vpop.f32.mrb[0].mxu0
      %v1254 = vadd.f32 0.0, %v1253
      %1255 = vmatprep.mubr.f32.mxu0 0.0
      %1256 = vmatmul.mubr.f32.gmra.mrb[0].mxu0 %v1126
      %v1257 = vpop.f32.mrb[0].mxu0
      %v1258 = vadd.f32 0.0, %v1257
      %v1259 = vpop.f32.mrb[0].mxu0
      %v1260 = vadd.f32 0.0, %v1259
      %1261 = vmatprep.mubr.f32.mxu0 0.0
      %1262 = vmatmul.mubr.f32.gmra.mrb[0].mxu0 %v1129
      %v1263 = vpop.f32.mrb[0].mxu0
      %v1264 = vadd.f32 0.0, %v1263
      %v1265 = vpop.f32.mrb[0].mxu0
      %v1266 = vadd.f32 0.0, %v1265
      %1267 = vmatprep.mubr.f32.mxu0 0.0
      %1268 = vmatmul.mubr.f32.gmra.mrb[0].mxu0 %v1132
      %v1269 = vpop.f32.mrb[0].mxu0
      %v1270 = vadd.f32 0.0, %v1269
      %v1271 = vpop.f32.mrb[0].mxu0
      %v1272 = vadd.f32 0.0, %v1271
      %1273 = vmatprep.mubr.f32.mxu0 0.0
      %1274 = vmatmul.mubr.f32.gmra.mrb[0].mxu0 %v1135
      %v1275 = vpop.f32.mrb[0].mxu0
      %v1276 = vadd.f32 0.0, %v1275
      %v1277 = vpop.f32.mrb[0].mxu0
      %v1278 = vadd.f32 0.0, %v1277
      %1279 = vmatprep.mubr.f32.mxu0 0.0
      %1280 = vmatmul.mubr.f32.gmra.mrb[0].mxu0 %v1138
      %v1281 = vpop.f32.mrb[0].mxu0
      %v1282 = vadd.f32 0.0, %v1281
      %v1283 = vpop.f32.mrb[0].mxu0
      %v1284 = vadd.f32 0.0, %v1283
      %1285 = vmatprep.mubr.f32.mxu0 0.0
      %1286 = vmatmul.mubr.f32.gmra.mrb[0].mxu0 %v1141
      %v1287 = vpop.f32.mrb[0].mxu0
      %v1288 = vadd.f32 0.0, %v1287
      %v1289 = vpop.f32.mrb[0].mxu0
      %v1290 = vadd.f32 0.0, %v1289
      %1291 = vmatprep.mubr.f32.mxu0 0.0
      %1292 = vmatmul.mubr.f32.gmra.mrb[0].mxu0 %v1144
      %v1293 = vpop.f32.mrb[0].mxu0
      %v1294 = vadd.f32 0.0, %v1293
      %v1295 = vpop.f32.mrb[0].mxu0
      %v1296 = vadd.f32 0.0, %v1295
      %1297 = vmatprep.mubr.f32.mxu0 0.0
      %1298 = vmatmul.mubr.f32.gmra.mrb[0].mxu0 %v1147
      %v1299 = vpop.f32.mrb[0].mxu0
      %v1300 = vadd.f32 0.0, %v1299
      %v1301 = vpop.f32.mrb[0].mxu0
      %v1302 = vadd.f32 0.0, %v1301
      %1303 = vmatprep.mubr.f32.mxu0 0.0
      %1304 = vmatmul.mubr.f32.gmra.mrb[0].mxu0 %v1150
      %v1305 = vpop.f32.mrb[0].mxu0
      %v1306 = vadd.f32 0.0, %v1305
      %v1307 = vpop.f32.mrb[0].mxu0
      %v1308 = vadd.f32 0.0, %v1307
      %1309 = vmatprep.mubr.f32.mxu0 0.0
      %1310 = vmatmul.mubr.f32.gmra.mrb[0].mxu0 %v1153
      %v1311 = vpop.f32.mrb[0].mxu0
      %v1312 = vadd.f32 0.0, %v1311
      %v1313 = vpop.f32.mrb[0].mxu0
      %v1314 = vadd.f32 0.0, %v1313
      %1315 = vdwg.mxu0
      %v1316 = vmul.f32 %v658, %v1222
      %v1317 = vmul.f32 %v660, %v1224
      %v1318 = vmul.f32 %v664, %v1228
      %v1319 = vmul.f32 %v666, %v1230
      %v1320 = vmul.f32 %v670, %v1234
      %v1321 = vmul.f32 %v672, %v1236
      %v1322 = vmul.f32 %v676, %v1240
      %v1323 = vmul.f32 %v678, %v1242
      %v1324 = vmul.f32 %v682, %v1246
      %v1325 = vmul.f32 %v684, %v1248
      %v1326 = vmul.f32 %v688, %v1252
      %v1327 = vmul.f32 %v690, %v1254
      %v1328 = vmul.f32 %v694, %v1258
      %v1329 = vmul.f32 %v696, %v1260
      %v1330 = vmul.f32 %v700, %v1264
      %v1331 = vmul.f32 %v702, %v1266
      %v1332 = vmul.f32 %v706, %v1270
      %v1333 = vmul.f32 %v708, %v1272
      %v1334 = vmul.f32 %v712, %v1276
      %v1335 = vmul.f32 %v714, %v1278
      %v1336 = vmul.f32 %v718, %v1282
      %v1337 = vmul.f32 %v720, %v1284
      %v1338 = vmul.f32 %v724, %v1288
      %v1339 = vmul.f32 %v726, %v1290
      %v1340 = vmul.f32 %v730, %v1294
      %v1341 = vmul.f32 %v732, %v1296
      %v1342 = vmul.f32 %v736, %v1300
      %v1343 = vmul.f32 %v738, %v1302
      %v1344 = vmul.f32 %v742, %v1306
      %v1345 = vmul.f32 %v744, %v1308
      %v1346 = vmul.f32 %v748, %v1312
      %v1347 = vmul.f32 %v750, %v1314
      %vm1348 = vcmask 261120
      %v1350 = vsel %vm1348, %v1317, 0
      %v1353 = vsel %vm1348, %v1319, 0
      %v1356 = vsel %vm1348, %v1321, 0
      %v1359 = vsel %vm1348, %v1323, 0
      %v1362 = vsel %vm1348, %v1325, 0
      %v1365 = vsel %vm1348, %v1327, 0
      %v1368 = vsel %vm1348, %v1329, 0
      %v1371 = vsel %vm1348, %v1331, 0
      %v1374 = vsel %vm1348, %v1333, 0
      %v1377 = vsel %vm1348, %v1335, 0
      %v1380 = vsel %vm1348, %v1337, 0
      %v1383 = vsel %vm1348, %v1339, 0
      %v1386 = vsel %vm1348, %v1341, 0
      %v1389 = vsel %vm1348, %v1343, 0
      %v1392 = vsel %vm1348, %v1345, 0
      %v1395 = vsel %vm1348, %v1347, 0
      %1397 = vmatprep.subr.mxu0 0.0
      %1398 = vmatpush1.msra.mxu0 %v478
      %1399 = vmatprep.subr.mxu0 0.0
      %1400 = vmatpush1.msra.mxu0 %v479
      %1401 = vmatprep.subr.mxu0 0.0
      %1402 = vmatpush1.msra.mxu0 %v480
      %1403 = vmatprep.subr.mxu0 0.0
      %1404 = vmatpush1.msra.mxu0 %v481
      %1405 = vmatprep.subr.mxu0 0.0
      %1406 = vmatpush1.msra.mxu0 %v482
      %1407 = vmatprep.subr.mxu0 0.0
      %1408 = vmatpush1.msra.mxu0 %v483
      %1409 = vmatprep.subr.mxu0 0.0
      %1410 = vmatpush1.msra.mxu0 %v484
      %1411 = vmatprep.subr.mxu0 0.0
      %1412 = vmatpush1.msra.mxu0 %v485
      %1413 = vmatprep.subr.mxu0 0.0
      %1414 = vmatpush1.msra.mxu0 %v486
      %1415 = vmatprep.subr.mxu0 0.0
      %1416 = vmatpush1.msra.mxu0 %v487
      %1417 = vmatprep.subr.mxu0 0.0
      %1418 = vmatpush1.msra.mxu0 %v488
      %1419 = vmatprep.subr.mxu0 0.0
      %1420 = vmatpush1.msra.mxu0 %v489
      %1421 = vmatprep.subr.mxu0 0.0
      %1422 = vmatpush1.msra.mxu0 %v490
      %1423 = vmatprep.subr.mxu0 0.0
      %1424 = vmatpush1.msra.mxu0 %v491
      %1425 = vmatprep.subr.mxu0 0.0
      %1426 = vmatpush1.msra.mxu0 %v492
      %1427 = vmatprep.subr.mxu0 0.0
      %1428 = vmatpush1.msra.mxu0 %v493
      %1429 = vmatprep.subr.mxu0 0.0
      %1430 = vmatpush1.msra.mxu0 %v494
      %1431 = vmatprep.subr.mxu0 0.0
      %1432 = vmatpush1.msra.mxu0 %v495
      %1433 = vmatprep.subr.mxu0 0.0
      %1434 = vmatpush1.msra.mxu0 %v496
      %1435 = vmatprep.subr.mxu0 0.0
      %1436 = vmatpush1.msra.mxu0 %v497
      %1437 = vmatprep.subr.mxu0 0.0
      %1438 = vmatpush1.msra.mxu0 0.0
      %1439 = vmatprep.subr.mxu0 0.0
      %1440 = vmatpush1.msra.mxu0 0.0
      %1441 = vmatprep.subr.mxu0 0.0
      %1442 = vmatpush1.msra.mxu0 0.0
      %1443 = vmatprep.subr.mxu0 0.0
      %1444 = vmatpush1.msra.mxu0 0.0
      %1445 = vmatprep.subr.mxu0 0.0
      %1446 = vmatpush1.msra.mxu0 0.0
      %1447 = vmatprep.subr.mxu0 0.0
      %1448 = vmatpush1.msra.mxu0 0.0
      %1449 = vmatprep.subr.mxu0 0.0
      %1450 = vmatpush1.msra.mxu0 0.0
      %1451 = vmatprep.subr.mxu0 0.0
      %1452 = vmatpush1.msra.mxu0 0.0
      %1453 = vmatprep.subr.mxu0 0.0
      %1454 = vmatpush1.msra.mxu0 0.0
      %1455 = vmatprep.subr.mxu0 0.0
      %1456 = vmatpush1.msra.mxu0 0.0
      %1457 = vmatprep.subr.mxu0 0.0
      %1458 = vmatpush1.msra.mxu0 0.0
      %1459 = vmatprep.subr.mxu0 0.0
      %1460 = vmatpush1.msra.mxu0 0.0
      %1461 = vmatprep.mubr.f32.mxu0 %v1350
      %1462 = vmatmul.mubr.f32.gmra.mrb[0].mxu0 %v1316
      %v1463 = vpop.f32.mrb[0].mxu0
      %v1464 = vadd.f32 0.0, %v1463
      %v1465 = vpop.f32.mrb[0].mxu0
      %1466 = vmatprep.mubr.f32.mxu0 %v1353
      %1467 = vmatmul.mubr.f32.gmra.mrb[0].mxu0 %v1318
      %v1468 = vpop.f32.mrb[0].mxu0
      %v1469 = vadd.f32 0.0, %v1468
      %v1470 = vpop.f32.mrb[0].mxu0
      %1471 = vmatprep.mubr.f32.mxu0 %v1356
      %1472 = vmatmul.mubr.f32.gmra.mrb[0].mxu0 %v1320
      %v1473 = vpop.f32.mrb[0].mxu0
      %v1474 = vadd.f32 0.0, %v1473
      %v1475 = vpop.f32.mrb[0].mxu0
      %1476 = vmatprep.mubr.f32.mxu0 %v1359
      %1477 = vmatmul.mubr.f32.gmra.mrb[0].mxu0 %v1322
      %v1478 = vpop.f32.mrb[0].mxu0
      %v1479 = vadd.f32 0.0, %v1478
      %v1480 = vpop.f32.mrb[0].mxu0
      %1481 = vmatprep.mubr.f32.mxu0 %v1362
      %1482 = vmatmul.mubr.f32.gmra.mrb[0].mxu0 %v1324
      %v1483 = vpop.f32.mrb[0].mxu0
      %v1484 = vadd.f32 0.0, %v1483
      %v1485 = vpop.f32.mrb[0].mxu0
      %1486 = vmatprep.mubr.f32.mxu0 %v1365
      %1487 = vmatmul.mubr.f32.gmra.mrb[0].mxu0 %v1326
      %v1488 = vpop.f32.mrb[0].mxu0
      %v1489 = vadd.f32 0.0, %v1488
      %v1490 = vpop.f32.mrb[0].mxu0
      %1491 = vmatprep.mubr.f32.mxu0 %v1368
      %1492 = vmatmul.mubr.f32.gmra.mrb[0].mxu0 %v1328
      %v1493 = vpop.f32.mrb[0].mxu0
      %v1494 = vadd.f32 0.0, %v1493
      %v1495 = vpop.f32.mrb[0].mxu0
      %1496 = vmatprep.mubr.f32.mxu0 %v1371
      %1497 = vmatmul.mubr.f32.gmra.mrb[0].mxu0 %v1330
      %v1498 = vpop.f32.mrb[0].mxu0
      %v1499 = vadd.f32 0.0, %v1498
      %v1500 = vpop.f32.mrb[0].mxu0
      %1501 = vmatprep.mubr.f32.mxu0 %v1374
      %1502 = vmatmul.mubr.f32.gmra.mrb[0].mxu0 %v1332
      %v1503 = vpop.f32.mrb[0].mxu0
      %v1504 = vadd.f32 0.0, %v1503
      %v1505 = vpop.f32.mrb[0].mxu0
      %1506 = vmatprep.mubr.f32.mxu0 %v1377
      %1507 = vmatmul.mubr.f32.gmra.mrb[0].mxu0 %v1334
      %v1508 = vpop.f32.mrb[0].mxu0
      %v1509 = vadd.f32 0.0, %v1508
      %v1510 = vpop.f32.mrb[0].mxu0
      %1511 = vmatprep.mubr.f32.mxu0 %v1380
      %1512 = vmatmul.mubr.f32.gmra.mrb[0].mxu0 %v1336
      %v1513 = vpop.f32.mrb[0].mxu0
      %v1514 = vadd.f32 0.0, %v1513
      %v1515 = vpop.f32.mrb[0].mxu0
      %1516 = vmatprep.mubr.f32.mxu0 %v1383
      %1517 = vmatmul.mubr.f32.gmra.mrb[0].mxu0 %v1338
      %v1518 = vpop.f32.mrb[0].mxu0
      %v1519 = vadd.f32 0.0, %v1518
      %v1520 = vpop.f32.mrb[0].mxu0
      %1521 = vmatprep.mubr.f32.mxu0 %v1386
      %1522 = vmatmul.mubr.f32.gmra.mrb[0].mxu0 %v1340
      %v1523 = vpop.f32.mrb[0].mxu0
      %v1524 = vadd.f32 0.0, %v1523
      %v1525 = vpop.f32.mrb[0].mxu0
      %1526 = vmatprep.mubr.f32.mxu0 %v1389
      %1527 = vmatmul.mubr.f32.gmra.mrb[0].mxu0 %v1342
      %v1528 = vpop.f32.mrb[0].mxu0
      %v1529 = vadd.f32 0.0, %v1528
      %v1530 = vpop.f32.mrb[0].mxu0
      %1531 = vmatprep.mubr.f32.mxu0 %v1392
      %1532 = vmatmul.mubr.f32.gmra.mrb[0].mxu0 %v1344
      %v1533 = vpop.f32.mrb[0].mxu0
      %v1534 = vadd.f32 0.0, %v1533
      %v1535 = vpop.f32.mrb[0].mxu0
      %1536 = vmatprep.mubr.f32.mxu0 %v1395
      %1537 = vmatmul.mubr.f32.gmra.mrb[0].mxu0 %v1346
      %v1538 = vpop.f32.mrb[0].mxu0
      %v1539 = vadd.f32 0.0, %v1538
      %v1540 = vpop.f32.mrb[0].mxu0
      %1541 = vdwg.mxu0
      %v1543 = vsel %vm542, %v302, 0
      %v1546 = vsel %vm542, %v303, 0
      %v1549 = vsel %vm542, %v304, 0
      %v1552 = vsel %vm542, %v305, 0
      %v1555 = vsel %vm542, %v306, 0
      %v1558 = vsel %vm542, %v307, 0
      %v1561 = vsel %vm542, %v308, 0
      %v1564 = vsel %vm542, %v309, 0
      %1566 = vmatprep.subr.mxu0 0.0
      %1567 = vmatpush1.msra.mxu0 %v526
      %1568 = vmatprep.subr.mxu0 0.0
      %1569 = vmatpush1.msra.mxu0 0.0
      %1570 = vmatprep.subr.mxu0 0.0
      %1571 = vmatpush1.msra.mxu0 0.0
      %1572 = vmatprep.subr.mxu0 0.0
      %1573 = vmatpush1.msra.mxu0 0.0
      %1574 = vmatprep.subr.mxu0 0.0
      %1575 = vmatpush1.msra.mxu0 0.0
      %1576 = vmatprep.subr.mxu0 0.0
      %1577 = vmatpush1.msra.mxu0 0.0
      %1578 = vmatprep.subr.mxu0 0.0
      %1579 = vmatpush1.msra.mxu0 0.0
      %1580 = vmatprep.subr.mxu0 0.0
      %1581 = vmatpush1.msra.mxu0 0.0
      %1582 = vmatprep.subr.mxu0 0.0
      %1583 = vmatpush1.msra.mxu0 0.0
      %1584 = vmatprep.subr.mxu0 0.0
      %1585 = vmatpush1.msra.mxu0 0.0
      %1586 = vmatprep.subr.mxu0 0.0
      %1587 = vmatpush1.msra.mxu0 0.0
      %1588 = vmatprep.subr.mxu0 0.0
      %1589 = vmatpush1.msra.mxu0 0.0
      %1590 = vmatprep.subr.mxu0 0.0
      %1591 = vmatpush1.msra.mxu0 0.0
      %1592 = vmatprep.subr.mxu0 0.0
      %1593 = vmatpush1.msra.mxu0 0.0
      %1594 = vmatprep.subr.mxu0 0.0
      %1595 = vmatpush1.msra.mxu0 0.0
      %1596 = vmatprep.subr.mxu0 0.0
      %1597 = vmatpush1.msra.mxu0 0.0
      %1598 = vmatprep.subr.mxu0 0.0
      %1599 = vmatpush1.msra.mxu0 0.0
      %1600 = vmatprep.subr.mxu0 0.0
      %1601 = vmatpush1.msra.mxu0 0.0
      %1602 = vmatprep.subr.mxu0 0.0
      %1603 = vmatpush1.msra.mxu0 0.0
      %1604 = vmatprep.subr.mxu0 0.0
      %1605 = vmatpush1.msra.mxu0 0.0
      %1606 = vmatprep.subr.mxu0 0.0
      %1607 = vmatpush1.msra.mxu0 0.0
      %1608 = vmatprep.subr.mxu0 0.0
      %1609 = vmatpush1.msra.mxu0 0.0
      %1610 = vmatprep.subr.mxu0 0.0
      %1611 = vmatpush1.msra.mxu0 0.0
      %1612 = vmatprep.subr.mxu0 0.0
      %1613 = vmatpush1.msra.mxu0 0.0
      %1614 = vmatprep.subr.mxu0 0.0
      %1615 = vmatpush1.msra.mxu0 0.0
      %1616 = vmatprep.subr.mxu0 0.0
      %1617 = vmatpush1.msra.mxu0 0.0
      %1618 = vmatprep.subr.mxu0 0.0
      %1619 = vmatpush1.msra.mxu0 0.0
      %1620 = vmatprep.subr.mxu0 0.0
      %1621 = vmatpush1.msra.mxu0 0.0
      %1622 = vmatprep.subr.mxu0 0.0
      %1623 = vmatpush1.msra.mxu0 0.0
      %1624 = vmatprep.subr.mxu0 0.0
      %1625 = vmatpush1.msra.mxu0 0.0
      %1626 = vmatprep.subr.mxu0 0.0
      %1627 = vmatpush1.msra.mxu0 0.0
      %1628 = vmatprep.subr.mxu0 0.0
      %1629 = vmatpush1.msra.mxu0 0.0
      %1630 = vmatprep.mubr.f32.mxu0 0.0
      %1631 = vmatmul.mubr.f32.gmra.mrb[0].mxu0 %v1543
      %v1632 = vpop.f32.mrb[0].mxu0
      %v1633 = vadd.f32 0.0, %v1632
      %v1634 = vpop.f32.mrb[0].mxu0
      %1635 = vmatprep.mubr.f32.mxu0 0.0
      %1636 = vmatmul.mubr.f32.gmra.mrb[0].mxu0 %v1546
      %v1637 = vpop.f32.mrb[0].mxu0
      %v1638 = vadd.f32 0.0, %v1637
      %v1639 = vpop.f32.mrb[0].mxu0
      %1640 = vmatprep.mubr.f32.mxu0 0.0
      %1641 = vmatmul.mubr.f32.gmra.mrb[0].mxu0 %v1549
      %v1642 = vpop.f32.mrb[0].mxu0
      %v1643 = vadd.f32 0.0, %v1642
      %v1644 = vpop.f32.mrb[0].mxu0
      %1645 = vmatprep.mubr.f32.mxu0 0.0
      %1646 = vmatmul.mubr.f32.gmra.mrb[0].mxu0 %v1552
      %v1647 = vpop.f32.mrb[0].mxu0
      %v1648 = vadd.f32 0.0, %v1647
      %v1649 = vpop.f32.mrb[0].mxu0
      %1650 = vmatprep.mubr.f32.mxu0 0.0
      %1651 = vmatmul.mubr.f32.gmra.mrb[0].mxu0 %v1555
      %v1652 = vpop.f32.mrb[0].mxu0
      %v1653 = vadd.f32 0.0, %v1652
      %v1654 = vpop.f32.mrb[0].mxu0
      %1655 = vmatprep.mubr.f32.mxu0 0.0
      %1656 = vmatmul.mubr.f32.gmra.mrb[0].mxu0 %v1558
      %v1657 = vpop.f32.mrb[0].mxu0
      %v1658 = vadd.f32 0.0, %v1657
      %v1659 = vpop.f32.mrb[0].mxu0
      %1660 = vmatprep.mubr.f32.mxu0 0.0
      %1661 = vmatmul.mubr.f32.gmra.mrb[0].mxu0 %v1561
      %v1662 = vpop.f32.mrb[0].mxu0
      %v1663 = vadd.f32 0.0, %v1662
      %v1664 = vpop.f32.mrb[0].mxu0
      %1665 = vmatprep.mubr.f32.mxu0 0.0
      %1666 = vmatmul.mubr.f32.gmra.mrb[0].mxu0 %v1564
      %v1667 = vpop.f32.mrb[0].mxu0
      %v1668 = vadd.f32 0.0, %v1667
      %v1669 = vpop.f32.mrb[0].mxu0
      %1670 = vdwg.mxu0
      %1671 = vmatprep.subr.mxu0 0.0
      %1672 = vmatpush1.msra.mxu0 %v1464
      %1673 = vmatprep.subr.mxu0 0.0
      %1674 = vmatpush1.msra.mxu0 %v1469
      %1675 = vmatprep.subr.mxu0 0.0
      %1676 = vmatpush1.msra.mxu0 %v1474
      %1677 = vmatprep.subr.mxu0 0.0
      %1678 = vmatpush1.msra.mxu0 %v1479
      %1679 = vmatprep.subr.mxu0 0.0
      %1680 = vmatpush1.msra.mxu0 %v1484
      %1681 = vmatprep.subr.mxu0 0.0
      %1682 = vmatpush1.msra.mxu0 %v1489
      %1683 = vmatprep.subr.mxu0 0.0
      %1684 = vmatpush1.msra.mxu0 %v1494
      %1685 = vmatprep.subr.mxu0 0.0
      %1686 = vmatpush1.msra.mxu0 %v1499
      %1687 = vmatprep.subr.mxu0 0.0
      %1688 = vmatpush1.msra.mxu0 %v1504
      %1689 = vmatprep.subr.mxu0 0.0
      %1690 = vmatpush1.msra.mxu0 %v1509
      %1691 = vmatprep.subr.mxu0 0.0
      %1692 = vmatpush1.msra.mxu0 %v1514
      %1693 = vmatprep.subr.mxu0 0.0
      %1694 = vmatpush1.msra.mxu0 %v1519
      %1695 = vmatprep.subr.mxu0 0.0
      %1696 = vmatpush1.msra.mxu0 %v1524
      %1697 = vmatprep.subr.mxu0 0.0
      %1698 = vmatpush1.msra.mxu0 %v1529
      %1699 = vmatprep.subr.mxu0 0.0
      %1700 = vmatpush1.msra.mxu0 %v1534
      %1701 = vmatprep.subr.mxu0 0.0
      %1702 = vmatpush1.msra.mxu0 %v1539
      %1703 = vmatprep.subr.mxu0 0.0
      %1704 = vmatpush1.msra.mxu0 0.0
      %1705 = vmatprep.subr.mxu0 0.0
      %1706 = vmatpush1.msra.mxu0 0.0
      %1707 = vmatprep.subr.mxu0 0.0
      %1708 = vmatpush1.msra.mxu0 0.0
      %1709 = vmatprep.subr.mxu0 0.0
      %1710 = vmatpush1.msra.mxu0 0.0
      %1711 = vmatprep.subr.mxu0 0.0
      %1712 = vmatpush1.msra.mxu0 0.0
      %1713 = vmatprep.subr.mxu0 0.0
      %1714 = vmatpush1.msra.mxu0 0.0
      %1715 = vmatprep.subr.mxu0 0.0
      %1716 = vmatpush1.msra.mxu0 0.0
      %1717 = vmatprep.subr.mxu0 0.0
      %1718 = vmatpush1.msra.mxu0 0.0
      %1719 = vmatprep.subr.mxu0 0.0
      %1720 = vmatpush1.msra.mxu0 0.0
      %1721 = vmatprep.subr.mxu0 0.0
      %1722 = vmatpush1.msra.mxu0 0.0
      %1723 = vmatprep.subr.mxu0 0.0
      %1724 = vmatpush1.msra.mxu0 0.0
      %1725 = vmatprep.subr.mxu0 0.0
      %1726 = vmatpush1.msra.mxu0 0.0
      %1727 = vmatprep.subr.mxu0 0.0
      %1728 = vmatpush1.msra.mxu0 0.0
      %1729 = vmatprep.subr.mxu0 0.0
      %1730 = vmatpush1.msra.mxu0 0.0
      %1731 = vmatprep.subr.mxu0 0.0
      %1732 = vmatpush1.msra.mxu0 0.0
      %1733 = vmatprep.subr.mxu0 0.0
      %1734 = vmatpush1.msra.mxu0 0.0
      %1735 = vmatprep.mubr.f32.mxu0 0.0
      %1736 = vmatmul.mubr.f32.gmra.mrb[0].mxu0 %v470
      %v1737 = vpop.f32.mrb[0].mxu0
      %v1738 = vadd.f32 %v1633, %v1737
      %v1739 = vpop.f32.mrb[0].mxu0
      %1740 = vmatprep.mubr.f32.mxu0 0.0
      %1741 = vmatmul.mubr.f32.gmra.mrb[0].mxu0 %v471
      %v1742 = vpop.f32.mrb[0].mxu0
      %v1743 = vadd.f32 %v1638, %v1742
      %v1744 = vpop.f32.mrb[0].mxu0
      %1745 = vmatprep.mubr.f32.mxu0 0.0
      %1746 = vmatmul.mubr.f32.gmra.mrb[0].mxu0 %v472
      %v1747 = vpop.f32.mrb[0].mxu0
      %v1748 = vadd.f32 %v1643, %v1747
      %v1749 = vpop.f32.mrb[0].mxu0
      %1750 = vmatprep.mubr.f32.mxu0 0.0
      %1751 = vmatmul.mubr.f32.gmra.mrb[0].mxu0 %v473
      %v1752 = vpop.f32.mrb[0].mxu0
      %v1753 = vadd.f32 %v1648, %v1752
      %v1754 = vpop.f32.mrb[0].mxu0
      %1755 = vmatprep.mubr.f32.mxu0 0.0
      %1756 = vmatmul.mubr.f32.gmra.mrb[0].mxu0 %v474
      %v1757 = vpop.f32.mrb[0].mxu0
      %v1758 = vadd.f32 %v1653, %v1757
      %v1759 = vpop.f32.mrb[0].mxu0
      %1760 = vmatprep.mubr.f32.mxu0 0.0
      %1761 = vmatmul.mubr.f32.gmra.mrb[0].mxu0 %v475
      %v1762 = vpop.f32.mrb[0].mxu0
      %v1763 = vadd.f32 %v1658, %v1762
      %v1764 = vpop.f32.mrb[0].mxu0
      %1765 = vmatprep.mubr.f32.mxu0 0.0
      %1766 = vmatmul.mubr.f32.gmra.mrb[0].mxu0 %v476
      %v1767 = vpop.f32.mrb[0].mxu0
      %v1768 = vadd.f32 %v1663, %v1767
      %v1769 = vpop.f32.mrb[0].mxu0
      %1770 = vmatprep.mubr.f32.mxu0 0.0
      %1771 = vmatmul.mubr.f32.gmra.mrb[0].mxu0 %v477
      %v1772 = vpop.f32.mrb[0].mxu0
      %v1773 = vadd.f32 %v1668, %v1772
      %v1774 = vpop.f32.mrb[0].mxu0
      %1775 = vdwg.mxu0
      %v1776 = vlaneseq
      %v1777 = vshrl.u32 %v1776, 7
      %v1778 = vsub.s32 0, %v1777
      %v1779 = vrot.slane %v527, %v1778
      %v1780 = vadd.f32 %v1738, %v1779
      %v1781 = vadd.f32 %v1743, %v1779
      %v1782 = vadd.f32 %v1748, %v1779
      %v1783 = vadd.f32 %v1753, %v1779
      %v1784 = vadd.f32 %v1758, %v1779
      %v1785 = vadd.f32 %v1763, %v1779
      %v1786 = vadd.f32 %v1768, %v1779
      %v1787 = vadd.f32 %v1773, %v1779
      %v1788 = vmax.f32 %v1780, 0.0
      %v1789 = vmax.f32 %v1781, 0.0
      %v1790 = vmax.f32 %v1782, 0.0
      %v1791 = vmax.f32 %v1783, 0.0
      %v1792 = vmax.f32 %v1784, 0.0
      %v1793 = vmax.f32 %v1785, 0.0
      %v1794 = vmax.f32 %v1786, 0.0
      %v1795 = vmax.f32 %v1787, 0.0
      %1796 = vmatprep.subr.mxu0 0.0
      %1797 = vmatpush1.msra.mxu0 %v1788
      %1798 = vmatprep.subr.mxu0 0.0
      %1799 = vmatpush1.msra.mxu0 %v1789
      %1800 = vmatprep.subr.mxu0 0.0
      %1801 = vmatpush1.msra.mxu0 %v1790
      %1802 = vmatprep.subr.mxu0 0.0
      %1803 = vmatpush1.msra.mxu0 %v1791
      %1804 = vmatprep.subr.mxu0 0.0
      %1805 = vmatpush1.msra.mxu0 %v1792
      %1806 = vmatprep.subr.mxu0 0.0
      %1807 = vmatpush1.msra.mxu0 %v1793
      %1808 = vmatprep.subr.mxu0 0.0
      %1809 = vmatpush1.msra.mxu0 %v1794
      %1810 = vmatprep.subr.mxu0 0.0
      %1811 = vmatpush1.msra.mxu0 %v1795
      %1812 = vmatprep.subr.mxu0 0.0
      %1813 = vmatpush1.msra.mxu0 0.0
      %1814 = vmatprep.subr.mxu0 0.0
      %1815 = vmatpush1.msra.mxu0 0.0
      %1816 = vmatprep.subr.mxu0 0.0
      %1817 = vmatpush1.msra.mxu0 0.0
      %1818 = vmatprep.subr.mxu0 0.0
      %1819 = vmatpush1.msra.mxu0 0.0
      %1820 = vmatprep.subr.mxu0 0.0
      %1821 = vmatpush1.msra.mxu0 0.0
      %1822 = vmatprep.subr.mxu0 0.0
      %1823 = vmatpush1.msra.mxu0 0.0
      %1824 = vmatprep.subr.mxu0 0.0
      %1825 = vmatpush1.msra.mxu0 0.0
      %1826 = vmatprep.subr.mxu0 0.0
      %1827 = vmatpush1.msra.mxu0 0.0
      %1828 = vmatprep.subr.mxu0 0.0
      %1829 = vmatpush1.msra.mxu0 0.0
      %1830 = vmatprep.subr.mxu0 0.0
      %1831 = vmatpush1.msra.mxu0 0.0
      %1832 = vmatprep.subr.mxu0 0.0
      %1833 = vmatpush1.msra.mxu0 0.0
      %1834 = vmatprep.subr.mxu0 0.0
      %1835 = vmatpush1.msra.mxu0 0.0
      %1836 = vmatprep.subr.mxu0 0.0
      %1837 = vmatpush1.msra.mxu0 0.0
      %1838 = vmatprep.subr.mxu0 0.0
      %1839 = vmatpush1.msra.mxu0 0.0
      %1840 = vmatprep.subr.mxu0 0.0
      %1841 = vmatpush1.msra.mxu0 0.0
      %1842 = vmatprep.subr.mxu0 0.0
      %1843 = vmatpush1.msra.mxu0 0.0
      %1844 = vmatprep.subr.mxu0 0.0
      %1845 = vmatpush1.msra.mxu0 0.0
      %1846 = vmatprep.subr.mxu0 0.0
      %1847 = vmatpush1.msra.mxu0 0.0
      %1848 = vmatprep.subr.mxu0 0.0
      %1849 = vmatpush1.msra.mxu0 0.0
      %1850 = vmatprep.subr.mxu0 0.0
      %1851 = vmatpush1.msra.mxu0 0.0
      %1852 = vmatprep.subr.mxu0 0.0
      %1853 = vmatpush1.msra.mxu0 0.0
      %1854 = vmatprep.subr.mxu0 0.0
      %1855 = vmatpush1.msra.mxu0 0.0
      %1856 = vmatprep.subr.mxu0 0.0
      %1857 = vmatpush1.msra.mxu0 0.0
      %1858 = vmatprep.subr.mxu0 0.0
      %1859 = vmatpush1.msra.mxu0 0.0
      %1860 = vmatprep.mubr.f32.mxu0 0.0
      %1861 = vmatmul.mubr.f32.gmra.mrb[0].mxu0 %v915
      %v1862 = vpop.f32.mrb[0].mxu0
      %v1863 = vadd.f32 0.0, %v1862
      %v1864 = vpop.f32.mrb[0].mxu0
      %1865 = vmatprep.mubr.f32.mxu0 0.0
      %1866 = vmatmul.mubr.f32.gmra.mrb[0].mxu0 %v918
      %v1867 = vpop.f32.mrb[0].mxu0
      %v1868 = vadd.f32 0.0, %v1867
      %v1869 = vpop.f32.mrb[0].mxu0
      %1870 = vmatprep.mubr.f32.mxu0 0.0
      %1871 = vmatmul.mubr.f32.gmra.mrb[0].mxu0 %v921
      %v1872 = vpop.f32.mrb[0].mxu0
      %v1873 = vadd.f32 0.0, %v1872
      %v1874 = vpop.f32.mrb[0].mxu0
      %1875 = vmatprep.mubr.f32.mxu0 0.0
      %1876 = vmatmul.mubr.f32.gmra.mrb[0].mxu0 %v924
      %v1877 = vpop.f32.mrb[0].mxu0
      %v1878 = vadd.f32 0.0, %v1877
      %v1879 = vpop.f32.mrb[0].mxu0
      %1880 = vmatprep.mubr.f32.mxu0 0.0
      %1881 = vmatmul.mubr.f32.gmra.mrb[0].mxu0 %v927
      %v1882 = vpop.f32.mrb[0].mxu0
      %v1883 = vadd.f32 0.0, %v1882
      %v1884 = vpop.f32.mrb[0].mxu0
      %1885 = vmatprep.mubr.f32.mxu0 0.0
      %1886 = vmatmul.mubr.f32.gmra.mrb[0].mxu0 %v930
      %v1887 = vpop.f32.mrb[0].mxu0
      %v1888 = vadd.f32 0.0, %v1887
      %v1889 = vpop.f32.mrb[0].mxu0
      %1890 = vmatprep.mubr.f32.mxu0 0.0
      %1891 = vmatmul.mubr.f32.gmra.mrb[0].mxu0 %v933
      %v1892 = vpop.f32.mrb[0].mxu0
      %v1893 = vadd.f32 0.0, %v1892
      %v1894 = vpop.f32.mrb[0].mxu0
      %1895 = vmatprep.mubr.f32.mxu0 0.0
      %1896 = vmatmul.mubr.f32.gmra.mrb[0].mxu0 %v936
      %v1897 = vpop.f32.mrb[0].mxu0
      %v1898 = vadd.f32 0.0, %v1897
      %v1899 = vpop.f32.mrb[0].mxu0
      %1900 = vmatprep.mubr.f32.mxu0 0.0
      %1901 = vmatmul.mubr.f32.gmra.mrb[0].mxu0 %v939
      %v1902 = vpop.f32.mrb[0].mxu0
      %v1903 = vadd.f32 0.0, %v1902
      %v1904 = vpop.f32.mrb[0].mxu0
      %1905 = vmatprep.mubr.f32.mxu0 0.0
      %1906 = vmatmul.mubr.f32.gmra.mrb[0].mxu0 %v942
      %v1907 = vpop.f32.mrb[0].mxu0
      %v1908 = vadd.f32 0.0, %v1907
      %v1909 = vpop.f32.mrb[0].mxu0
      %1910 = vmatprep.mubr.f32.mxu0 0.0
      %1911 = vmatmul.mubr.f32.gmra.mrb[0].mxu0 %v945
      %v1912 = vpop.f32.mrb[0].mxu0
      %v1913 = vadd.f32 0.0, %v1912
      %v1914 = vpop.f32.mrb[0].mxu0
      %1915 = vmatprep.mubr.f32.mxu0 0.0
      %1916 = vmatmul.mubr.f32.gmra.mrb[0].mxu0 %v948
      %v1917 = vpop.f32.mrb[0].mxu0
      %v1918 = vadd.f32 0.0, %v1917
      %v1919 = vpop.f32.mrb[0].mxu0
      %1920 = vmatprep.mubr.f32.mxu0 0.0
      %1921 = vmatmul.mubr.f32.gmra.mrb[0].mxu0 %v951
      %v1922 = vpop.f32.mrb[0].mxu0
      %v1923 = vadd.f32 0.0, %v1922
      %v1924 = vpop.f32.mrb[0].mxu0
      %1925 = vmatprep.mubr.f32.mxu0 0.0
      %1926 = vmatmul.mubr.f32.gmra.mrb[0].mxu0 %v954
      %v1927 = vpop.f32.mrb[0].mxu0
      %v1928 = vadd.f32 0.0, %v1927
      %v1929 = vpop.f32.mrb[0].mxu0
      %1930 = vmatprep.mubr.f32.mxu0 0.0
      %1931 = vmatmul.mubr.f32.gmra.mrb[0].mxu0 %v957
      %v1932 = vpop.f32.mrb[0].mxu0
      %v1933 = vadd.f32 0.0, %v1932
      %v1934 = vpop.f32.mrb[0].mxu0
      %1935 = vmatprep.mubr.f32.mxu0 0.0
      %1936 = vmatmul.mubr.f32.gmra.mrb[0].mxu0 %v960
      %v1937 = vpop.f32.mrb[0].mxu0
      %v1938 = vadd.f32 0.0, %v1937
      %v1939 = vpop.f32.mrb[0].mxu0
      %1940 = vdwg.mxu0
      %v1942 = vsel %vm1348, %v1863, 0
      %v1945 = vsel %vm1348, %v1868, 0
      %v1948 = vsel %vm1348, %v1873, 0
      %v1951 = vsel %vm1348, %v1878, 0
      %v1954 = vsel %vm1348, %v1883, 0
      %v1957 = vsel %vm1348, %v1888, 0
      %v1960 = vsel %vm1348, %v1893, 0
      %v1963 = vsel %vm1348, %v1898, 0
      %v1966 = vsel %vm1348, %v1903, 0
      %v1969 = vsel %vm1348, %v1908, 0
      %v1972 = vsel %vm1348, %v1913, 0
      %v1975 = vsel %vm1348, %v1918, 0
      %v1978 = vsel %vm1348, %v1923, 0
      %v1981 = vsel %vm1348, %v1928, 0
      %v1984 = vsel %vm1348, %v1933, 0
      %v1987 = vsel %vm1348, %v1938, 0
      %1989 = vmatprep.subr.mxu0 %v535
      %1990 = vmatpush1.msra.mxu0 %v534
      %1991 = vmatprep.subr.mxu0 %v537
      %1992 = vmatpush1.msra.mxu0 %v536
      %1993 = vmatprep.subr.mxu0 %v539
      %1994 = vmatpush1.msra.mxu0 %v538
      %1995 = vmatprep.subr.mxu0 %v541
      %1996 = vmatpush1.msra.mxu0 %v540
      %1997 = vmatprep.subr.mxu0 0.0
      %1998 = vmatpush1.msra.mxu0 0.0
      %1999 = vmatprep.subr.mxu0 0.0
      %2000 = vmatpush1.msra.mxu0 0.0
      %2001 = vmatprep.subr.mxu0 0.0
      %2002 = vmatpush1.msra.mxu0 0.0
      %2003 = vmatprep.subr.mxu0 0.0
      %2004 = vmatpush1.msra.mxu0 0.0
      %2005 = vmatprep.subr.mxu0 0.0
      %2006 = vmatpush1.msra.mxu0 0.0
      %2007 = vmatprep.subr.mxu0 0.0
      %2008 = vmatpush1.msra.mxu0 0.0
      %2009 = vmatprep.subr.mxu0 0.0
      %2010 = vmatpush1.msra.mxu0 0.0
      %2011 = vmatprep.subr.mxu0 0.0
      %2012 = vmatpush1.msra.mxu0 0.0
      %2013 = vmatprep.subr.mxu0 0.0
      %2014 = vmatpush1.msra.mxu0 0.0
      %2015 = vmatprep.subr.mxu0 0.0
      %2016 = vmatpush1.msra.mxu0 0.0
      %2017 = vmatprep.subr.mxu0 0.0
      %2018 = vmatpush1.msra.mxu0 0.0
      %2019 = vmatprep.subr.mxu0 0.0
      %2020 = vmatpush1.msra.mxu0 0.0
      %2021 = vmatprep.subr.mxu0 0.0
      %2022 = vmatpush1.msra.mxu0 0.0
      %2023 = vmatprep.subr.mxu0 0.0
      %2024 = vmatpush1.msra.mxu0 0.0
      %2025 = vmatprep.subr.mxu0 0.0
      %2026 = vmatpush1.msra.mxu0 0.0
      %2027 = vmatprep.subr.mxu0 0.0
      %2028 = vmatpush1.msra.mxu0 0.0
      %2029 = vmatprep.subr.mxu0 0.0
      %2030 = vmatpush1.msra.mxu0 0.0
      %2031 = vmatprep.subr.mxu0 0.0
      %2032 = vmatpush1.msra.mxu0 0.0
      %2033 = vmatprep.subr.mxu0 0.0
      %2034 = vmatpush1.msra.mxu0 0.0
      %2035 = vmatprep.subr.mxu0 0.0
      %2036 = vmatpush1.msra.mxu0 0.0
      %2037 = vmatprep.subr.mxu0 0.0
      %2038 = vmatpush1.msra.mxu0 0.0
      %2039 = vmatprep.subr.mxu0 0.0
      %2040 = vmatpush1.msra.mxu0 0.0
      %2041 = vmatprep.subr.mxu0 0.0
      %2042 = vmatpush1.msra.mxu0 0.0
      %2043 = vmatprep.subr.mxu0 0.0
      %2044 = vmatpush1.msra.mxu0 0.0
      %2045 = vmatprep.subr.mxu0 0.0
      %2046 = vmatpush1.msra.mxu0 0.0
      %2047 = vmatprep.subr.mxu0 0.0
      %2048 = vmatpush1.msra.mxu0 0.0
      %2049 = vmatprep.subr.mxu0 0.0
      %2050 = vmatpush1.msra.mxu0 0.0
      %2051 = vmatprep.subr.mxu0 0.0
      %2052 = vmatpush1.msra.mxu0 0.0
      %2053 = vmatprep.mubr.f32.mxu0 0.0
      %2054 = vmatmul.mubr.f32.gmra.mrb[0].mxu0 %v1942
      %v2055 = vpop.f32.mrb[0].mxu0
      %v2056 = vadd.f32 0.0, %v2055
      %v2057 = vpop.f32.mrb[0].mxu0
      %v2058 = vadd.f32 0.0, %v2057
      %2059 = vmatprep.mubr.f32.mxu0 0.0
      %2060 = vmatmul.mubr.f32.gmra.mrb[0].mxu0 %v1945
      %v2061 = vpop.f32.mrb[0].mxu0
      %v2062 = vadd.f32 0.0, %v2061
      %v2063 = vpop.f32.mrb[0].mxu0
      %v2064 = vadd.f32 0.0, %v2063
      %2065 = vmatprep.mubr.f32.mxu0 0.0
      %2066 = vmatmul.mubr.f32.gmra.mrb[0].mxu0 %v1948
      %v2067 = vpop.f32.mrb[0].mxu0
      %v2068 = vadd.f32 0.0, %v2067
      %v2069 = vpop.f32.mrb[0].mxu0
      %v2070 = vadd.f32 0.0, %v2069
      %2071 = vmatprep.mubr.f32.mxu0 0.0
      %2072 = vmatmul.mubr.f32.gmra.mrb[0].mxu0 %v1951
      %v2073 = vpop.f32.mrb[0].mxu0
      %v2074 = vadd.f32 0.0, %v2073
      %v2075 = vpop.f32.mrb[0].mxu0
      %v2076 = vadd.f32 0.0, %v2075
      %2077 = vmatprep.mubr.f32.mxu0 0.0
      %2078 = vmatmul.mubr.f32.gmra.mrb[0].mxu0 %v1954
      %v2079 = vpop.f32.mrb[0].mxu0
      %v2080 = vadd.f32 0.0, %v2079
      %v2081 = vpop.f32.mrb[0].mxu0
      %v2082 = vadd.f32 0.0, %v2081
      %2083 = vmatprep.mubr.f32.mxu0 0.0
      %2084 = vmatmul.mubr.f32.gmra.mrb[0].mxu0 %v1957
      %v2085 = vpop.f32.mrb[0].mxu0
      %v2086 = vadd.f32 0.0, %v2085
      %v2087 = vpop.f32.mrb[0].mxu0
      %v2088 = vadd.f32 0.0, %v2087
      %2089 = vmatprep.mubr.f32.mxu0 0.0
      %2090 = vmatmul.mubr.f32.gmra.mrb[0].mxu0 %v1960
      %v2091 = vpop.f32.mrb[0].mxu0
      %v2092 = vadd.f32 0.0, %v2091
      %v2093 = vpop.f32.mrb[0].mxu0
      %v2094 = vadd.f32 0.0, %v2093
      %2095 = vmatprep.mubr.f32.mxu0 0.0
      %2096 = vmatmul.mubr.f32.gmra.mrb[0].mxu0 %v1963
      %v2097 = vpop.f32.mrb[0].mxu0
      %v2098 = vadd.f32 0.0, %v2097
      %v2099 = vpop.f32.mrb[0].mxu0
      %v2100 = vadd.f32 0.0, %v2099
      %2101 = vmatprep.mubr.f32.mxu0 0.0
      %2102 = vmatmul.mubr.f32.gmra.mrb[0].mxu0 %v1966
      %v2103 = vpop.f32.mrb[0].mxu0
      %v2104 = vadd.f32 0.0, %v2103
      %v2105 = vpop.f32.mrb[0].mxu0
      %v2106 = vadd.f32 0.0, %v2105
      %2107 = vmatprep.mubr.f32.mxu0 0.0
      %2108 = vmatmul.mubr.f32.gmra.mrb[0].mxu0 %v1969
      %v2109 = vpop.f32.mrb[0].mxu0
      %v2110 = vadd.f32 0.0, %v2109
      %v2111 = vpop.f32.mrb[0].mxu0
      %v2112 = vadd.f32 0.0, %v2111
      %2113 = vmatprep.mubr.f32.mxu0 0.0
      %2114 = vmatmul.mubr.f32.gmra.mrb[0].mxu0 %v1972
      %v2115 = vpop.f32.mrb[0].mxu0
      %v2116 = vadd.f32 0.0, %v2115
      %v2117 = vpop.f32.mrb[0].mxu0
      %v2118 = vadd.f32 0.0, %v2117
      %2119 = vmatprep.mubr.f32.mxu0 0.0
      %2120 = vmatmul.mubr.f32.gmra.mrb[0].mxu0 %v1975
      %v2121 = vpop.f32.mrb[0].mxu0
      %v2122 = vadd.f32 0.0, %v2121
      %v2123 = vpop.f32.mrb[0].mxu0
      %v2124 = vadd.f32 0.0, %v2123
      %2125 = vmatprep.mubr.f32.mxu0 0.0
      %2126 = vmatmul.mubr.f32.gmra.mrb[0].mxu0 %v1978
      %v2127 = vpop.f32.mrb[0].mxu0
      %v2128 = vadd.f32 0.0, %v2127
      %v2129 = vpop.f32.mrb[0].mxu0
      %v2130 = vadd.f32 0.0, %v2129
      %2131 = vmatprep.mubr.f32.mxu0 0.0
      %2132 = vmatmul.mubr.f32.gmra.mrb[0].mxu0 %v1981
      %v2133 = vpop.f32.mrb[0].mxu0
      %v2134 = vadd.f32 0.0, %v2133
      %v2135 = vpop.f32.mrb[0].mxu0
      %v2136 = vadd.f32 0.0, %v2135
      %2137 = vmatprep.mubr.f32.mxu0 0.0
      %2138 = vmatmul.mubr.f32.gmra.mrb[0].mxu0 %v1984
      %v2139 = vpop.f32.mrb[0].mxu0
      %v2140 = vadd.f32 0.0, %v2139
      %v2141 = vpop.f32.mrb[0].mxu0
      %v2142 = vadd.f32 0.0, %v2141
      %2143 = vmatprep.mubr.f32.mxu0 0.0
      %2144 = vmatmul.mubr.f32.gmra.mrb[0].mxu0 %v1987
      %v2145 = vpop.f32.mrb[0].mxu0
      %v2146 = vadd.f32 0.0, %v2145
      %v2147 = vpop.f32.mrb[0].mxu0
      %v2148 = vadd.f32 0.0, %v2147
      %2149 = vdwg.mxu0
      %v2150 = vmul.f32 %v819, %v2056
      %v2151 = vmul.f32 %v821, %v2058
      %v2152 = vmul.f32 %v825, %v2062
      %v2153 = vmul.f32 %v827, %v2064
      %v2154 = vmul.f32 %v831, %v2068
      %v2155 = vmul.f32 %v833, %v2070
      %v2156 = vmul.f32 %v837, %v2074
      %v2157 = vmul.f32 %v839, %v2076
      %v2158 = vmul.f32 %v843, %v2080
      %v2159 = vmul.f32 %v845, %v2082
      %v2160 = vmul.f32 %v849, %v2086
      %v2161 = vmul.f32 %v851, %v2088
      %v2162 = vmul.f32 %v855, %v2092
      %v2163 = vmul.f32 %v857, %v2094
      %v2164 = vmul.f32 %v861, %v2098
      %v2165 = vmul.f32 %v863, %v2100
      %v2166 = vmul.f32 %v867, %v2104
      %v2167 = vmul.f32 %v869, %v2106
      %v2168 = vmul.f32 %v873, %v2110
      %v2169 = vmul.f32 %v875, %v2112
      %v2170 = vmul.f32 %v879, %v2116
      %v2171 = vmul.f32 %v881, %v2118
      %v2172 = vmul.f32 %v885, %v2122
      %v2173 = vmul.f32 %v887, %v2124
      %v2174 = vmul.f32 %v891, %v2128
      %v2175 = vmul.f32 %v893, %v2130
      %v2176 = vmul.f32 %v897, %v2134
      %v2177 = vmul.f32 %v899, %v2136
      %v2178 = vmul.f32 %v903, %v2140
      %v2179 = vmul.f32 %v905, %v2142
      %v2180 = vmul.f32 %v909, %v2146
      %v2181 = vmul.f32 %v911, %v2148
      %v2183 = vsel %vm1348, %v2151, 0
      %v2186 = vsel %vm1348, %v2153, 0
      %v2189 = vsel %vm1348, %v2155, 0
      %v2192 = vsel %vm1348, %v2157, 0
      %v2195 = vsel %vm1348, %v2159, 0
      %v2198 = vsel %vm1348, %v2161, 0
      %v2201 = vsel %vm1348, %v2163, 0
      %v2204 = vsel %vm1348, %v2165, 0
      %v2207 = vsel %vm1348, %v2167, 0
      %v2210 = vsel %vm1348, %v2169, 0
      %v2213 = vsel %vm1348, %v2171, 0
      %v2216 = vsel %vm1348, %v2173, 0
      %v2219 = vsel %vm1348, %v2175, 0
      %v2222 = vsel %vm1348, %v2177, 0
      %v2225 = vsel %vm1348, %v2179, 0
      %v2228 = vsel %vm1348, %v2181, 0
      %2230 = vmatprep.subr.mxu0 0.0
      %2231 = vmatpush1.msra.mxu0 %v498
      %2232 = vmatprep.subr.mxu0 0.0
      %2233 = vmatpush1.msra.mxu0 %v499
      %2234 = vmatprep.subr.mxu0 0.0
      %2235 = vmatpush1.msra.mxu0 %v500
      %2236 = vmatprep.subr.mxu0 0.0
      %2237 = vmatpush1.msra.mxu0 %v501
      %2238 = vmatprep.subr.mxu0 0.0
      %2239 = vmatpush1.msra.mxu0 %v502
      %2240 = vmatprep.subr.mxu0 0.0
      %2241 = vmatpush1.msra.mxu0 %v503
      %2242 = vmatprep.subr.mxu0 0.0
      %2243 = vmatpush1.msra.mxu0 %v504
      %2244 = vmatprep.subr.mxu0 0.0
      %2245 = vmatpush1.msra.mxu0 %v505
      %2246 = vmatprep.subr.mxu0 0.0
      %2247 = vmatpush1.msra.mxu0 %v506
      %2248 = vmatprep.subr.mxu0 0.0
      %2249 = vmatpush1.msra.mxu0 %v507
      %2250 = vmatprep.subr.mxu0 0.0
      %2251 = vmatpush1.msra.mxu0 %v508
      %2252 = vmatprep.subr.mxu0 0.0
      %2253 = vmatpush1.msra.mxu0 %v509
      %2254 = vmatprep.subr.mxu0 0.0
      %2255 = vmatpush1.msra.mxu0 %v510
      %2256 = vmatprep.subr.mxu0 0.0
      %2257 = vmatpush1.msra.mxu0 %v511
      %2258 = vmatprep.subr.mxu0 0.0
      %2259 = vmatpush1.msra.mxu0 %v512
      %2260 = vmatprep.subr.mxu0 0.0
      %2261 = vmatpush1.msra.mxu0 %v513
      %2262 = vmatprep.subr.mxu0 0.0
      %2263 = vmatpush1.msra.mxu0 %v514
      %2264 = vmatprep.subr.mxu0 0.0
      %2265 = vmatpush1.msra.mxu0 %v515
      %2266 = vmatprep.subr.mxu0 0.0
      %2267 = vmatpush1.msra.mxu0 %v516
      %2268 = vmatprep.subr.mxu0 0.0
      %2269 = vmatpush1.msra.mxu0 %v517
      %2270 = vmatprep.subr.mxu0 0.0
      %2271 = vmatpush1.msra.mxu0 0.0
      %2272 = vmatprep.subr.mxu0 0.0
      %2273 = vmatpush1.msra.mxu0 0.0
      %2274 = vmatprep.subr.mxu0 0.0
      %2275 = vmatpush1.msra.mxu0 0.0
      %2276 = vmatprep.subr.mxu0 0.0
      %2277 = vmatpush1.msra.mxu0 0.0
      %2278 = vmatprep.subr.mxu0 0.0
      %2279 = vmatpush1.msra.mxu0 0.0
      %2280 = vmatprep.subr.mxu0 0.0
      %2281 = vmatpush1.msra.mxu0 0.0
      %2282 = vmatprep.subr.mxu0 0.0
      %2283 = vmatpush1.msra.mxu0 0.0
      %2284 = vmatprep.subr.mxu0 0.0
      %2285 = vmatpush1.msra.mxu0 0.0
      %2286 = vmatprep.subr.mxu0 0.0
      %2287 = vmatpush1.msra.mxu0 0.0
      %2288 = vmatprep.subr.mxu0 0.0
      %2289 = vmatpush1.msra.mxu0 0.0
      %2290 = vmatprep.subr.mxu0 0.0
      %2291 = vmatpush1.msra.mxu0 0.0
      %2292 = vmatprep.subr.mxu0 0.0
      %2293 = vmatpush1.msra.mxu0 0.0
      %2294 = vmatprep.mubr.f32.mxu0 %v2183
      %2295 = vmatmul.mubr.f32.gmra.mrb[0].mxu0 %v2150
      %v2296 = vpop.f32.mrb[0].mxu0
      %v2297 = vadd.f32 0.0, %v2296
      %v2298 = vpop.f32.mrb[0].mxu0
      %2299 = vmatprep.mubr.f32.mxu0 %v2186
      %2300 = vmatmul.mubr.f32.gmra.mrb[0].mxu0 %v2152
      %v2301 = vpop.f32.mrb[0].mxu0
      %v2302 = vadd.f32 0.0, %v2301
      %v2303 = vpop.f32.mrb[0].mxu0
      %2304 = vmatprep.mubr.f32.mxu0 %v2189
      %2305 = vmatmul.mubr.f32.gmra.mrb[0].mxu0 %v2154
      %v2306 = vpop.f32.mrb[0].mxu0
      %v2307 = vadd.f32 0.0, %v2306
      %v2308 = vpop.f32.mrb[0].mxu0
      %2309 = vmatprep.mubr.f32.mxu0 %v2192
      %2310 = vmatmul.mubr.f32.gmra.mrb[0].mxu0 %v2156
      %v2311 = vpop.f32.mrb[0].mxu0
      %v2312 = vadd.f32 0.0, %v2311
      %v2313 = vpop.f32.mrb[0].mxu0
      %2314 = vmatprep.mubr.f32.mxu0 %v2195
      %2315 = vmatmul.mubr.f32.gmra.mrb[0].mxu0 %v2158
      %v2316 = vpop.f32.mrb[0].mxu0
      %v2317 = vadd.f32 0.0, %v2316
      %v2318 = vpop.f32.mrb[0].mxu0
      %2319 = vmatprep.mubr.f32.mxu0 %v2198
      %2320 = vmatmul.mubr.f32.gmra.mrb[0].mxu0 %v2160
      %v2321 = vpop.f32.mrb[0].mxu0
      %v2322 = vadd.f32 0.0, %v2321
      %v2323 = vpop.f32.mrb[0].mxu0
      %2324 = vmatprep.mubr.f32.mxu0 %v2201
      %2325 = vmatmul.mubr.f32.gmra.mrb[0].mxu0 %v2162
      %v2326 = vpop.f32.mrb[0].mxu0
      %v2327 = vadd.f32 0.0, %v2326
      %v2328 = vpop.f32.mrb[0].mxu0
      %2329 = vmatprep.mubr.f32.mxu0 %v2204
      %2330 = vmatmul.mubr.f32.gmra.mrb[0].mxu0 %v2164
      %v2331 = vpop.f32.mrb[0].mxu0
      %v2332 = vadd.f32 0.0, %v2331
      %v2333 = vpop.f32.mrb[0].mxu0
      %2334 = vmatprep.mubr.f32.mxu0 %v2207
      %2335 = vmatmul.mubr.f32.gmra.mrb[0].mxu0 %v2166
      %v2336 = vpop.f32.mrb[0].mxu0
      %v2337 = vadd.f32 0.0, %v2336
      %v2338 = vpop.f32.mrb[0].mxu0
      %2339 = vmatprep.mubr.f32.mxu0 %v2210
      %2340 = vmatmul.mubr.f32.gmra.mrb[0].mxu0 %v2168
      %v2341 = vpop.f32.mrb[0].mxu0
      %v2342 = vadd.f32 0.0, %v2341
      %v2343 = vpop.f32.mrb[0].mxu0
      %2344 = vmatprep.mubr.f32.mxu0 %v2213
      %2345 = vmatmul.mubr.f32.gmra.mrb[0].mxu0 %v2170
      %v2346 = vpop.f32.mrb[0].mxu0
      %v2347 = vadd.f32 0.0, %v2346
      %v2348 = vpop.f32.mrb[0].mxu0
      %2349 = vmatprep.mubr.f32.mxu0 %v2216
      %2350 = vmatmul.mubr.f32.gmra.mrb[0].mxu0 %v2172
      %v2351 = vpop.f32.mrb[0].mxu0
      %v2352 = vadd.f32 0.0, %v2351
      %v2353 = vpop.f32.mrb[0].mxu0
      %2354 = vmatprep.mubr.f32.mxu0 %v2219
      %2355 = vmatmul.mubr.f32.gmra.mrb[0].mxu0 %v2174
      %v2356 = vpop.f32.mrb[0].mxu0
      %v2357 = vadd.f32 0.0, %v2356
      %v2358 = vpop.f32.mrb[0].mxu0
      %2359 = vmatprep.mubr.f32.mxu0 %v2222
      %2360 = vmatmul.mubr.f32.gmra.mrb[0].mxu0 %v2176
      %v2361 = vpop.f32.mrb[0].mxu0
      %v2362 = vadd.f32 0.0, %v2361
      %v2363 = vpop.f32.mrb[0].mxu0
      %2364 = vmatprep.mubr.f32.mxu0 %v2225
      %2365 = vmatmul.mubr.f32.gmra.mrb[0].mxu0 %v2178
      %v2366 = vpop.f32.mrb[0].mxu0
      %v2367 = vadd.f32 0.0, %v2366
      %v2368 = vpop.f32.mrb[0].mxu0
      %2369 = vmatprep.mubr.f32.mxu0 %v2228
      %2370 = vmatmul.mubr.f32.gmra.mrb[0].mxu0 %v2180
      %v2371 = vpop.f32.mrb[0].mxu0
      %v2372 = vadd.f32 0.0, %v2371
      %v2373 = vpop.f32.mrb[0].mxu0
      %2374 = vdwg.mxu0
      %v2376 = vsel %vm1348, %v1788, 0
      %v2379 = vsel %vm1348, %v1789, 0
      %v2382 = vsel %vm1348, %v1790, 0
      %v2385 = vsel %vm1348, %v1791, 0
      %v2388 = vsel %vm1348, %v1792, 0
      %v2391 = vsel %vm1348, %v1793, 0
      %v2394 = vsel %vm1348, %v1794, 0
      %v2397 = vsel %vm1348, %v1795, 0
      %2399 = vmatprep.subr.mxu0 0.0
      %2400 = vmatpush1.msra.mxu0 %v518
      %2401 = vmatprep.subr.mxu0 0.0
      %2402 = vmatpush1.msra.mxu0 %v519
      %2403 = vmatprep.subr.mxu0 0.0
      %2404 = vmatpush1.msra.mxu0 %v520
      %2405 = vmatprep.subr.mxu0 0.0
      %2406 = vmatpush1.msra.mxu0 %v521
      %2407 = vmatprep.subr.mxu0 0.0
      %2408 = vmatpush1.msra.mxu0 0.0
      %2409 = vmatprep.subr.mxu0 0.0
      %2410 = vmatpush1.msra.mxu0 0.0
      %2411 = vmatprep.subr.mxu0 0.0
      %2412 = vmatpush1.msra.mxu0 0.0
      %2413 = vmatprep.subr.mxu0 0.0
      %2414 = vmatpush1.msra.mxu0 0.0
      %2415 = vmatprep.subr.mxu0 0.0
      %2416 = vmatpush1.msra.mxu0 0.0
      %2417 = vmatprep.subr.mxu0 0.0
      %2418 = vmatpush1.msra.mxu0 0.0
      %2419 = vmatprep.subr.mxu0 0.0
      %2420 = vmatpush1.msra.mxu0 0.0
      %2421 = vmatprep.subr.mxu0 0.0
      %2422 = vmatpush1.msra.mxu0 0.0
      %2423 = vmatprep.subr.mxu0 0.0
      %2424 = vmatpush1.msra.mxu0 0.0
      %2425 = vmatprep.subr.mxu0 0.0
      %2426 = vmatpush1.msra.mxu0 0.0
      %2427 = vmatprep.subr.mxu0 0.0
      %2428 = vmatpush1.msra.mxu0 0.0
      %2429 = vmatprep.subr.mxu0 0.0
      %2430 = vmatpush1.msra.mxu0 0.0
      %2431 = vmatprep.subr.mxu0 0.0
      %2432 = vmatpush1.msra.mxu0 0.0
      %2433 = vmatprep.subr.mxu0 0.0
      %2434 = vmatpush1.msra.mxu0 0.0
      %2435 = vmatprep.subr.mxu0 0.0
      %2436 = vmatpush1.msra.mxu0 0.0
      %2437 = vmatprep.subr.mxu0 0.0
      %2438 = vmatpush1.msra.mxu0 0.0
      %2439 = vmatprep.subr.mxu0 0.0
      %2440 = vmatpush1.msra.mxu0 0.0
      %2441 = vmatprep.subr.mxu0 0.0
      %2442 = vmatpush1.msra.mxu0 0.0
      %2443 = vmatprep.subr.mxu0 0.0
      %2444 = vmatpush1.msra.mxu0 0.0
      %2445 = vmatprep.subr.mxu0 0.0
      %2446 = vmatpush1.msra.mxu0 0.0
      %2447 = vmatprep.subr.mxu0 0.0
      %2448 = vmatpush1.msra.mxu0 0.0
      %2449 = vmatprep.subr.mxu0 0.0
      %2450 = vmatpush1.msra.mxu0 0.0
      %2451 = vmatprep.subr.mxu0 0.0
      %2452 = vmatpush1.msra.mxu0 0.0
      %2453 = vmatprep.subr.mxu0 0.0
      %2454 = vmatpush1.msra.mxu0 0.0
      %2455 = vmatprep.subr.mxu0 0.0
      %2456 = vmatpush1.msra.mxu0 0.0
      %2457 = vmatprep.subr.mxu0 0.0
      %2458 = vmatpush1.msra.mxu0 0.0
      %2459 = vmatprep.subr.mxu0 0.0
      %2460 = vmatpush1.msra.mxu0 0.0
      %2461 = vmatprep.subr.mxu0 0.0
      %2462 = vmatpush1.msra.mxu0 0.0
      %2463 = vmatprep.mubr.f32.mxu0 0.0
      %2464 = vmatmul.mubr.f32.gmra.mrb[0].mxu0 %v2376
      %v2465 = vpop.f32.mrb[0].mxu0
      %v2466 = vadd.f32 0.0, %v2465
      %v2467 = vpop.f32.mrb[0].mxu0
      %2468 = vmatprep.mubr.f32.mxu0 0.0
      %2469 = vmatmul.mubr.f32.gmra.mrb[0].mxu0 %v2379
      %v2470 = vpop.f32.mrb[0].mxu0
      %v2471 = vadd.f32 0.0, %v2470
      %v2472 = vpop.f32.mrb[0].mxu0
      %2473 = vmatprep.mubr.f32.mxu0 0.0
      %2474 = vmatmul.mubr.f32.gmra.mrb[0].mxu0 %v2382
      %v2475 = vpop.f32.mrb[0].mxu0
      %v2476 = vadd.f32 0.0, %v2475
      %v2477 = vpop.f32.mrb[0].mxu0
      %2478 = vmatprep.mubr.f32.mxu0 0.0
      %2479 = vmatmul.mubr.f32.gmra.mrb[0].mxu0 %v2385
      %v2480 = vpop.f32.mrb[0].mxu0
      %v2481 = vadd.f32 0.0, %v2480
      %v2482 = vpop.f32.mrb[0].mxu0
      %2483 = vmatprep.mubr.f32.mxu0 0.0
      %2484 = vmatmul.mubr.f32.gmra.mrb[0].mxu0 %v2388
      %v2485 = vpop.f32.mrb[0].mxu0
      %v2486 = vadd.f32 0.0, %v2485
      %v2487 = vpop.f32.mrb[0].mxu0
      %2488 = vmatprep.mubr.f32.mxu0 0.0
      %2489 = vmatmul.mubr.f32.gmra.mrb[0].mxu0 %v2391
      %v2490 = vpop.f32.mrb[0].mxu0
      %v2491 = vadd.f32 0.0, %v2490
      %v2492 = vpop.f32.mrb[0].mxu0
      %2493 = vmatprep.mubr.f32.mxu0 0.0
      %2494 = vmatmul.mubr.f32.gmra.mrb[0].mxu0 %v2394
      %v2495 = vpop.f32.mrb[0].mxu0
      %v2496 = vadd.f32 0.0, %v2495
      %v2497 = vpop.f32.mrb[0].mxu0
      %2498 = vmatprep.mubr.f32.mxu0 0.0
      %2499 = vmatmul.mubr.f32.gmra.mrb[0].mxu0 %v2397
      %v2500 = vpop.f32.mrb[0].mxu0
      %v2501 = vadd.f32 0.0, %v2500
      %v2502 = vpop.f32.mrb[0].mxu0
      %2503 = vdwg.mxu0
      %2504 = vmatprep.subr.mxu0 0.0
      %2505 = vmatpush1.msra.mxu0 %v2297
      %2506 = vmatprep.subr.mxu0 0.0
      %2507 = vmatpush1.msra.mxu0 %v2302
      %2508 = vmatprep.subr.mxu0 0.0
      %2509 = vmatpush1.msra.mxu0 %v2307
      %2510 = vmatprep.subr.mxu0 0.0
      %2511 = vmatpush1.msra.mxu0 %v2312
      %2512 = vmatprep.subr.mxu0 0.0
      %2513 = vmatpush1.msra.mxu0 %v2317
      %2514 = vmatprep.subr.mxu0 0.0
      %2515 = vmatpush1.msra.mxu0 %v2322
      %2516 = vmatprep.subr.mxu0 0.0
      %2517 = vmatpush1.msra.mxu0 %v2327
      %2518 = vmatprep.subr.mxu0 0.0
      %2519 = vmatpush1.msra.mxu0 %v2332
      %2520 = vmatprep.subr.mxu0 0.0
      %2521 = vmatpush1.msra.mxu0 %v2337
      %2522 = vmatprep.subr.mxu0 0.0
      %2523 = vmatpush1.msra.mxu0 %v2342
      %2524 = vmatprep.subr.mxu0 0.0
      %2525 = vmatpush1.msra.mxu0 %v2347
      %2526 = vmatprep.subr.mxu0 0.0
      %2527 = vmatpush1.msra.mxu0 %v2352
      %2528 = vmatprep.subr.mxu0 0.0
      %2529 = vmatpush1.msra.mxu0 %v2357
      %2530 = vmatprep.subr.mxu0 0.0
      %2531 = vmatpush1.msra.mxu0 %v2362
      %2532 = vmatprep.subr.mxu0 0.0
      %2533 = vmatpush1.msra.mxu0 %v2367
      %2534 = vmatprep.subr.mxu0 0.0
      %2535 = vmatpush1.msra.mxu0 %v2372
      %2536 = vmatprep.subr.mxu0 0.0
      %2537 = vmatpush1.msra.mxu0 0.0
      %2538 = vmatprep.subr.mxu0 0.0
      %2539 = vmatpush1.msra.mxu0 0.0
      %2540 = vmatprep.subr.mxu0 0.0
      %2541 = vmatpush1.msra.mxu0 0.0
      %2542 = vmatprep.subr.mxu0 0.0
      %2543 = vmatpush1.msra.mxu0 0.0
      %2544 = vmatprep.subr.mxu0 0.0
      %2545 = vmatpush1.msra.mxu0 0.0
      %2546 = vmatprep.subr.mxu0 0.0
      %2547 = vmatpush1.msra.mxu0 0.0
      %2548 = vmatprep.subr.mxu0 0.0
      %2549 = vmatpush1.msra.mxu0 0.0
      %2550 = vmatprep.subr.mxu0 0.0
      %2551 = vmatpush1.msra.mxu0 0.0
      %2552 = vmatprep.subr.mxu0 0.0
      %2553 = vmatpush1.msra.mxu0 0.0
      %2554 = vmatprep.subr.mxu0 0.0
      %2555 = vmatpush1.msra.mxu0 0.0
      %2556 = vmatprep.subr.mxu0 0.0
      %2557 = vmatpush1.msra.mxu0 0.0
      %2558 = vmatprep.subr.mxu0 0.0
      %2559 = vmatpush1.msra.mxu0 0.0
      %2560 = vmatprep.subr.mxu0 0.0
      %2561 = vmatpush1.msra.mxu0 0.0
      %2562 = vmatprep.subr.mxu0 0.0
      %2563 = vmatpush1.msra.mxu0 0.0
      %2564 = vmatprep.subr.mxu0 0.0
      %2565 = vmatpush1.msra.mxu0 0.0
      %2566 = vmatprep.subr.mxu0 0.0
      %2567 = vmatpush1.msra.mxu0 0.0
      %2568 = vmatprep.mubr.f32.mxu0 0.0
      %2569 = vmatmul.mubr.f32.gmra.mrb[0].mxu0 %v470
      %v2570 = vpop.f32.mrb[0].mxu0
      %v2571 = vadd.f32 %v2466, %v2570
      %v2572 = vpop.f32.mrb[0].mxu0
      %2573 = vmatprep.mubr.f32.mxu0 0.0
      %2574 = vmatmul.mubr.f32.gmra.mrb[0].mxu0 %v471
      %v2575 = vpop.f32.mrb[0].mxu0
      %v2576 = vadd.f32 %v2471, %v2575
      %v2577 = vpop.f32.mrb[0].mxu0
      %2578 = vmatprep.mubr.f32.mxu0 0.0
      %2579 = vmatmul.mubr.f32.gmra.mrb[0].mxu0 %v472
      %v2580 = vpop.f32.mrb[0].mxu0
      %v2581 = vadd.f32 %v2476, %v2580
      %v2582 = vpop.f32.mrb[0].mxu0
      %2583 = vmatprep.mubr.f32.mxu0 0.0
      %2584 = vmatmul.mubr.f32.gmra.mrb[0].mxu0 %v473
      %v2585 = vpop.f32.mrb[0].mxu0
      %v2586 = vadd.f32 %v2481, %v2585
      %v2587 = vpop.f32.mrb[0].mxu0
      %2588 = vmatprep.mubr.f32.mxu0 0.0
      %2589 = vmatmul.mubr.f32.gmra.mrb[0].mxu0 %v474
      %v2590 = vpop.f32.mrb[0].mxu0
      %v2591 = vadd.f32 %v2486, %v2590
      %v2592 = vpop.f32.mrb[0].mxu0
      %2593 = vmatprep.mubr.f32.mxu0 0.0
      %2594 = vmatmul.mubr.f32.gmra.mrb[0].mxu0 %v475
      %v2595 = vpop.f32.mrb[0].mxu0
      %v2596 = vadd.f32 %v2491, %v2595
      %v2597 = vpop.f32.mrb[0].mxu0
      %2598 = vmatprep.mubr.f32.mxu0 0.0
      %2599 = vmatmul.mubr.f32.gmra.mrb[0].mxu0 %v476
      %v2600 = vpop.f32.mrb[0].mxu0
      %v2601 = vadd.f32 %v2496, %v2600
      %v2602 = vpop.f32.mrb[0].mxu0
      %2603 = vmatprep.mubr.f32.mxu0 0.0
      %2604 = vmatmul.mubr.f32.gmra.mrb[0].mxu0 %v477
      %v2605 = vpop.f32.mrb[0].mxu0
      %v2606 = vadd.f32 %v2501, %v2605
      %v2607 = vpop.f32.mrb[0].mxu0
      %2608 = vdwg.mxu0
      %v2609 = vlaneseq
      %v2610 = vshrl.u32 %v2609, 7
      %v2611 = vsub.s32 1, %v2610
      %v2612 = vrot.slane %v527, %v2611
      %v2613 = vadd.f32 %v2571, %v2612
      %v2614 = vadd.f32 %v2576, %v2612
      %v2615 = vadd.f32 %v2581, %v2612
      %v2616 = vadd.f32 %v2586, %v2612
      %v2617 = vadd.f32 %v2591, %v2612
      %v2618 = vadd.f32 %v2596, %v2612
      %v2619 = vadd.f32 %v2601, %v2612
      %v2620 = vadd.f32 %v2606, %v2612
      %v2621 = vmax.f32 %v2613, 0.0
      %v2622 = vmax.f32 %v2614, 0.0
      %v2623 = vmax.f32 %v2615, 0.0
      %v2624 = vmax.f32 %v2616, 0.0
      %v2625 = vmax.f32 %v2617, 0.0
      %v2626 = vmax.f32 %v2618, 0.0
      %v2627 = vmax.f32 %v2619, 0.0
      %v2628 = vmax.f32 %v2620, 0.0
      %v2629 = vlaneseq
      %v2630 = vshrl.u32 %v2629, 7
      %v2631 = vsub.s32 2, %v2630
      %v2632 = vrot.slane %v527, %v2631
      %v2634 = vsel %vm1348, %v2621, 0
      %v2637 = vsel %vm1348, %v2622, 0
      %v2640 = vsel %vm1348, %v2623, 0
      %v2643 = vsel %vm1348, %v2624, 0
      %v2646 = vsel %vm1348, %v2625, 0
      %v2649 = vsel %vm1348, %v2626, 0
      %v2652 = vsel %vm1348, %v2627, 0
      %v2655 = vsel %vm1348, %v2628, 0
      %2657 = vmatprep.subr.mxu0 0.0
      %2658 = vmatpush1.msra.mxu0 %v522
      %2659 = vmatprep.subr.mxu0 0.0
      %2660 = vmatpush1.msra.mxu0 %v523
      %2661 = vmatprep.subr.mxu0 0.0
      %2662 = vmatpush1.msra.mxu0 %v524
      %2663 = vmatprep.subr.mxu0 0.0
      %2664 = vmatpush1.msra.mxu0 %v525
      %2665 = vmatprep.subr.mxu0 0.0
      %2666 = vmatpush1.msra.mxu0 0.0
      %2667 = vmatprep.subr.mxu0 0.0
      %2668 = vmatpush1.msra.mxu0 0.0
      %2669 = vmatprep.subr.mxu0 0.0
      %2670 = vmatpush1.msra.mxu0 0.0
      %2671 = vmatprep.subr.mxu0 0.0
      %2672 = vmatpush1.msra.mxu0 0.0
      %2673 = vmatprep.subr.mxu0 0.0
      %2674 = vmatpush1.msra.mxu0 0.0
      %2675 = vmatprep.subr.mxu0 0.0
      %2676 = vmatpush1.msra.mxu0 0.0
      %2677 = vmatprep.subr.mxu0 0.0
      %2678 = vmatpush1.msra.mxu0 0.0
      %2679 = vmatprep.subr.mxu0 0.0
      %2680 = vmatpush1.msra.mxu0 0.0
      %2681 = vmatprep.subr.mxu0 0.0
      %2682 = vmatpush1.msra.mxu0 0.0
      %2683 = vmatprep.subr.mxu0 0.0
      %2684 = vmatpush1.msra.mxu0 0.0
      %2685 = vmatprep.subr.mxu0 0.0
      %2686 = vmatpush1.msra.mxu0 0.0
      %2687 = vmatprep.subr.mxu0 0.0
      %2688 = vmatpush1.msra.mxu0 0.0
      %2689 = vmatprep.subr.mxu0 0.0
      %2690 = vmatpush1.msra.mxu0 0.0
      %2691 = vmatprep.subr.mxu0 0.0
      %2692 = vmatpush1.msra.mxu0 0.0
      %2693 = vmatprep.subr.mxu0 0.0
      %2694 = vmatpush1.msra.mxu0 0.0
      %2695 = vmatprep.subr.mxu0 0.0
      %2696 = vmatpush1.msra.mxu0 0.0
      %2697 = vmatprep.subr.mxu0 0.0
      %2698 = vmatpush1.msra.mxu0 0.0
      %2699 = vmatprep.subr.mxu0 0.0
      %2700 = vmatpush1.msra.mxu0 0.0
      %2701 = vmatprep.subr.mxu0 0.0
      %2702 = vmatpush1.msra.mxu0 0.0
      %2703 = vmatprep.subr.mxu0 0.0
      %2704 = vmatpush1.msra.mxu0 0.0
      %2705 = vmatprep.subr.mxu0 0.0
      %2706 = vmatpush1.msra.mxu0 0.0
      %2707 = vmatprep.subr.mxu0 0.0
      %2708 = vmatpush1.msra.mxu0 0.0
      %2709 = vmatprep.subr.mxu0 0.0
      %2710 = vmatpush1.msra.mxu0 0.0
      %2711 = vmatprep.subr.mxu0 0.0
      %2712 = vmatpush1.msra.mxu0 0.0
      %2713 = vmatprep.subr.mxu0 0.0
      %2714 = vmatpush1.msra.mxu0 0.0
      %2715 = vmatprep.subr.mxu0 0.0
      %2716 = vmatpush1.msra.mxu0 0.0
      %2717 = vmatprep.subr.mxu0 0.0
      %2718 = vmatpush1.msra.mxu0 0.0
      %2719 = vmatprep.subr.mxu0 0.0
      %2720 = vmatpush1.msra.mxu0 0.0
      %2721 = vmatprep.mubr.f32.mxu0 0.0
      %2722 = vmatmul.mubr.f32.gmra.mrb[0].mxu0 %v2634
      %v2723 = vpop.f32.mrb[0].mxu0
      %v2724 = vadd.f32 %v2632, %v2723
      %v2725 = vpop.f32.mrb[0].mxu0
      %2726 = vmatprep.mubr.f32.mxu0 0.0
      %2727 = vmatmul.mubr.f32.gmra.mrb[0].mxu0 %v2637
      %v2728 = vpop.f32.mrb[0].mxu0
      %v2729 = vadd.f32 %v2632, %v2728
      %v2730 = vpop.f32.mrb[0].mxu0
      %2731 = vmatprep.mubr.f32.mxu0 0.0
      %2732 = vmatmul.mubr.f32.gmra.mrb[0].mxu0 %v2640
      %v2733 = vpop.f32.mrb[0].mxu0
      %v2734 = vadd.f32 %v2632, %v2733
      %v2735 = vpop.f32.mrb[0].mxu0
      %2736 = vmatprep.mubr.f32.mxu0 0.0
      %2737 = vmatmul.mubr.f32.gmra.mrb[0].mxu0 %v2643
      %v2738 = vpop.f32.mrb[0].mxu0
      %v2739 = vadd.f32 %v2632, %v2738
      %v2740 = vpop.f32.mrb[0].mxu0
      %2741 = vmatprep.mubr.f32.mxu0 0.0
      %2742 = vmatmul.mubr.f32.gmra.mrb[0].mxu0 %v2646
      %v2743 = vpop.f32.mrb[0].mxu0
      %v2744 = vadd.f32 %v2632, %v2743
      %v2745 = vpop.f32.mrb[0].mxu0
      %2746 = vmatprep.mubr.f32.mxu0 0.0
      %2747 = vmatmul.mubr.f32.gmra.mrb[0].mxu0 %v2649
      %v2748 = vpop.f32.mrb[0].mxu0
      %v2749 = vadd.f32 %v2632, %v2748
      %v2750 = vpop.f32.mrb[0].mxu0
      %2751 = vmatprep.mubr.f32.mxu0 0.0
      %2752 = vmatmul.mubr.f32.gmra.mrb[0].mxu0 %v2652
      %v2753 = vpop.f32.mrb[0].mxu0
      %v2754 = vadd.f32 %v2632, %v2753
      %v2755 = vpop.f32.mrb[0].mxu0
      %2756 = vmatprep.mubr.f32.mxu0 0.0
      %2757 = vmatmul.mubr.f32.gmra.mrb[0].mxu0 %v2655
      %v2758 = vpop.f32.mrb[0].mxu0
      %v2759 = vadd.f32 %v2632, %v2758
      %v2760 = vpop.f32.mrb[0].mxu0
      %2761 = vdwg.mxu0
      %v2762 = vmax.f32 %v2724, 0.0
      %v2763 = vmax.f32 %v2729, 0.0
      %v2764 = vmax.f32 %v2734, 0.0
      %v2765 = vmax.f32 %v2739, 0.0
      %v2766 = vmax.f32 %v2744, 0.0
      %v2767 = vmax.f32 %v2749, 0.0
      %v2768 = vmax.f32 %v2754, 0.0
      %v2769 = vmax.f32 %v2759, 0.0
      %2771 = vset.pattern.permute.xlu0 0
      %2772 = vperm.xlu0 %2771, %v527
      %v2773 = vpop.permute.xlu0 %2772
      %v2774 = vrot.slane %v527, 3
      %v2775 = vrot.slane %v2773, 4
      %v2777 = vsel %vm1348, %v2774, 0
      %v2780 = vsel %vm1348, %v2762, 0
      %v2783 = vsel %vm1348, %v2763, 0
      %v2786 = vsel %vm1348, %v2764, 0
      %v2789 = vsel %vm1348, %v2765, 0
      %v2792 = vsel %vm1348, %v2766, 0
      %v2795 = vsel %vm1348, %v2767, 0
      %v2798 = vsel %vm1348, %v2768, 0
      %v2801 = vsel %vm1348, %v2769, 0
      %2803 = vmatprep.subr.mxu0 0.0
      %2804 = vmatpush1.xpose.msra.mxu0 %v2780
      %2805 = vmatprep.subr.mxu0 0.0
      %2806 = vmatpush1.xpose.msra.mxu0 %v2783
      %2807 = vmatprep.subr.mxu0 0.0
      %2808 = vmatpush1.xpose.msra.mxu0 %v2786
      %2809 = vmatprep.subr.mxu0 0.0
      %2810 = vmatpush1.xpose.msra.mxu0 %v2789
      %2811 = vmatprep.subr.mxu0 0.0
      %2812 = vmatpush1.xpose.msra.mxu0 %v2792
      %2813 = vmatprep.subr.mxu0 0.0
      %2814 = vmatpush1.xpose.msra.mxu0 %v2795
      %2815 = vmatprep.subr.mxu0 0.0
      %2816 = vmatpush1.xpose.msra.mxu0 %v2798
      %2817 = vmatprep.subr.mxu0 0.0
      %2818 = vmatpush1.xpose.msra.mxu0 %v2801
      %2819 = vmatprep.subr.mxu0 0.0
      %2820 = vmatpush1.xpose.msra.mxu0 0.0
      %2821 = vmatprep.subr.mxu0 0.0
      %2822 = vmatpush1.xpose.msra.mxu0 0.0
      %2823 = vmatprep.subr.mxu0 0.0
      %2824 = vmatpush1.xpose.msra.mxu0 0.0
      %2825 = vmatprep.subr.mxu0 0.0
      %2826 = vmatpush1.xpose.msra.mxu0 0.0
      %2827 = vmatprep.subr.mxu0 0.0
      %2828 = vmatpush1.xpose.msra.mxu0 0.0
      %2829 = vmatprep.subr.mxu0 0.0
      %2830 = vmatpush1.xpose.msra.mxu0 0.0
      %2831 = vmatprep.subr.mxu0 0.0
      %2832 = vmatpush1.xpose.msra.mxu0 0.0
      %2833 = vmatprep.subr.mxu0 0.0
      %2834 = vmatpush1.xpose.msra.mxu0 0.0
      %2835 = vmatprep.subr.mxu0 0.0
      %2836 = vmatpush1.xpose.msra.mxu0 0.0
      %2837 = vmatprep.subr.mxu0 0.0
      %2838 = vmatpush1.xpose.msra.mxu0 0.0
      %2839 = vmatprep.subr.mxu0 0.0
      %2840 = vmatpush1.xpose.msra.mxu0 0.0
      %2841 = vmatprep.subr.mxu0 0.0
      %2842 = vmatpush1.xpose.msra.mxu0 0.0
      %2843 = vmatprep.subr.mxu0 0.0
      %2844 = vmatpush1.xpose.msra.mxu0 0.0
      %2845 = vmatprep.subr.mxu0 0.0
      %2846 = vmatpush1.xpose.msra.mxu0 0.0
      %2847 = vmatprep.subr.mxu0 0.0
      %2848 = vmatpush1.xpose.msra.mxu0 0.0
      %2849 = vmatprep.subr.mxu0 0.0
      %2850 = vmatpush1.xpose.msra.mxu0 0.0
      %2851 = vmatprep.subr.mxu0 0.0
      %2852 = vmatpush1.xpose.msra.mxu0 0.0
      %2853 = vmatprep.subr.mxu0 0.0
      %2854 = vmatpush1.xpose.msra.mxu0 0.0
      %2855 = vmatprep.subr.mxu0 0.0
      %2856 = vmatpush1.xpose.msra.mxu0 0.0
      %2857 = vmatprep.subr.mxu0 0.0
      %2858 = vmatpush1.xpose.msra.mxu0 0.0
      %2859 = vmatprep.subr.mxu0 0.0
      %2860 = vmatpush1.xpose.msra.mxu0 0.0
      %2861 = vmatprep.subr.mxu0 0.0
      %2862 = vmatpush1.xpose.msra.mxu0 0.0
      %2863 = vmatprep.subr.mxu0 0.0
      %2864 = vmatpush1.xpose.msra.mxu0 0.0
      %2865 = vmatprep.subr.mxu0 0.0
      %2866 = vmatpush1.xpose.msra.mxu0 0.0
      %2867 = vmatprep.mubr.f32.mxu0 0.0
      %2868 = vmatmul.mubr.f32.gmra.mrb[0].mxu0 %v2777
      %v2869 = vpop.f32.mrb[0].mxu0
      %v2870 = vadd.f32 %v2775, %v2869
      %v2871 = vpop.f32.mrb[0].mxu0
      %2872 = vdwg.mxu0
      %vm2873 = vcmask 516096
      %2874 = vst.msk [vmem:[%s301] sm:$0x1] %vm2873, %v2870
      %p2875 = scmp.lt.s32.totalorder %s17, 1
      %s2876 = scalar_select %p2875, %s17, 1
      %s2877 = scalar_lea.vmem %s6, %s2876
      // Predicated region
      $region45: #{net_mp_forward.1} parent=43 // pred_check
        %p2878 = pneg %p181
      $region46: #{net_mp_forward.1} parent=43 // pred_check_branch
        %2880 = sbr.rel (%p2878) target = $region48
      $region47: #{net_mp_forward.1} parent=43 // pred_region
        _
      $region48: #{net_mp_forward.1} parent=43 // pred_fallthru
        _
    $region44: #{net_mp_forward.1} parent=5 // pred_fallthru
      _
    %p2881 = scmp.le.s32.totalorder 2, %s12
    // Predicated region
    $region49: #{net_mp_forward.1} parent=5 // pred_check
      %p2882 = pneg %p2881
    $region50: #{net_mp_forward.1} parent=5 // pred_check_branch
      %2884 = sbr.rel (%p2882) target = $region52
    $region51: #{net_mp_forward.1} parent=5 // pred_region
      %s2885 = ssub.s32 %s12, 2
      // Predicated region
      $region53: #{net_mp_forward.1} parent=51 // pred_check
        %p2886 = pneg %p187
      $region54: #{net_mp_forward.1} parent=51 // pred_check_branch
        %2888 = sbr.rel (%p2886) target = $region56
      $region55: #{net_mp_forward.1} parent=51 // pred_region
        %p2889 = scmp.lt.s32.totalorder %s18, 1
        %s2890 = scalar_select %p2889, %s18, 1
        %s2891 = scalar_lea.vmem %s6, %s2890
      $region56: #{net_mp_forward.1} parent=51 // pred_fallthru
        _
    $region52: #{net_mp_forward.1} parent=5 // pred_fallthru
      _
  $region6: #{net_mp_forward.1} parent=0 // loop_footer
    %s16 = sadd.s32 1, %s12
  $region7: #{net_mp_forward.1} parent=0 // loop_footer_branch
    %11 = sbr.rel target = $region3
  $region8: #{net_mp_forward.1} parent=0 // loop_exit
    _

</llo_original>
